<compile_context>
chip_gen: v7x
topology: tpu7x:2x2x1
jax: 0.10.0
libtpu: 0.0.40
codegen_flags: <defaults>
</compile_context>

<pallas_src>
import math

import numpy as np
import jax
import jax.numpy as jnp
from jax import lax
from jax.experimental import pallas as pl

# ---- config (small synthetic Llama) ----
B, T = 2, 8            # batch, sequence length
D, H, HD = 64, 2, 32   # hidden, heads, head_dim
F = 128                # ffn hidden
V = 512                # vocab size
N_LABELS = 3           # config.num_labels
N_PAD = 128            # lane-dense padded classifier output width
EPS = 1e-5
BT = B * T

# synthetic tokenizer.encode(label) outputs (variable-length token-id lists)
LABEL_NAME_IDS = [[3, 17], [42], [100, 7, 250]]


# ----------------------------- shared math helpers -----------------------------
def _rms(x, w):
    return x * lax.rsqrt(jnp.mean(x * x, axis=-1, keepdims=True) + EPS) * w


def _rotate_half(x):   # used by the pure-JAX reference only
    half = x.shape[-1] // 2
    return jnp.concatenate([-x[:, half:], x[:, :half]], axis=-1)


def _bf(x):
    return x.astype(jnp.bfloat16)


def _mm(a, b):
    # bf16 operands (MXU native), f32 accumulation.
    return jnp.dot(_bf(a), _bf(b), preferred_element_type=jnp.float32)


def _mm_nt(a, b):
    # a (M, K) x b (N, K) -> (M, N): contraction over the last dim of both,
    # no explicitly materialized transpose.
    return lax.dot_general(_bf(a), _bf(b), (((1,), (1,)), ((), ())),
                           preferred_element_type=jnp.float32)


# ----------------------------- fused Pallas kernel -----------------------------
def fused_classifier_kernel(x_ref, wq_ref, wk_ref, wv_ref, wo_ref,
                            wg_ref, wu_ref, wd_ref, wlm_ref, rot_ref,
                            rms1_ref, rms2_ref, rmsf_ref,
                            cos_ref, sin_ref, bias_ref, lmat_ref, out_ref):
    x = x_ref[...]                                  # (BT, D) f32
    cos = cos_ref[...]                              # (BT, D) f32, tiled per batch/head
    sin = sin_ref[...]
    rot = rot_ref[...]                              # (D, D) bf16 +/-1 rotate_half matrix
    bias = bias_ref[...]                            # (BT, BT) f32 block-causal additive mask

    # ---- attention sub-layer ----
    h1 = _rms(x, rms1_ref[...])
    q = _mm(h1, wq_ref[...])
    k = _mm(h1, wk_ref[...])
    v = _mm(h1, wv_ref[...])

    # full-width RoPE: rotate_half done as a permutation matmul on the MXU
    q = q * cos + _mm(q, rot) * sin
    k = k * cos + _mm(k, rot) * sin

    scale = 1.0 / math.sqrt(HD)
    ctx = []
    for hh in range(H):                             # static loop, H == 2
        sl = slice(hh * HD, (hh + 1) * HD)
        s = _mm_nt(q[:, sl], k[:, sl]) * scale + bias   # (BT, BT), whole batch at once
        s = s - jnp.max(s, axis=-1, keepdims=True)
        p = jnp.exp(s)
        p = p / jnp.sum(p, axis=-1, keepdims=True)
        ctx.append(_mm(p, v[:, sl]))
    attn = jnp.concatenate(ctx, axis=-1)            # (BT, D)
    x = x + _mm(attn, wo_ref[...])

    # ---- SwiGLU MLP sub-layer ----
    h2 = _rms(x, rms2_ref[...])
    g = _mm(h2, wg_ref[...])
    u = _mm(h2, wu_ref[...])
    x = x + _mm(g * jax.nn.sigmoid(g) * u, wd_ref[...])

    # ---- final norm + lm head + zero-shot head, position 0 only ----
    x0 = jnp.concatenate([x[b * T:b * T + 1, :] for b in range(B)], axis=0)  # (B, D)
    hf = _rms(x0, rmsf_ref[...])
    logits = _mm(hf, wlm_ref[...])                  # (B, V)
    m = jnp.max(logits, axis=-1, keepdims=True)
    lse = jnp.log(jnp.sum(jnp.exp(logits - m), axis=-1, keepdims=True)) + m
    logp = logits - lse                             # (B, V) log-probabilities
    # multi-hot label-count matmul -> lane-dense (B, 128) store
    out_ref[...] = _mm(logp, lmat_ref[...])


# ----------------------------- wrapper -----------------------------
def llama_zero_shot_classifier(input_ids, params, consts):
    # "self.llama(input_ids)": embedding gather stays as host-side XLA glue.
    x = jnp.take(params["embed"], input_ids.reshape(-1), axis=0)   # (BT, D) f32

    out = pl.pallas_call(
        fused_classifier_kernel,
        out_shape=jax.ShapeDtypeStruct((B, N_PAD), jnp.float32),
    )(x,
      params["wq"], params["wk"], params["wv"], params["wo"],
      params["wg"], params["wu"], params["wd"], params["wlm"],
      consts["rot"],
      params["rms1"], params["rms2"], params["rmsf"],
      consts["cos_full"], consts["sin_full"], consts["bias"], consts["label_mat"])
    return out[:, :N_LABELS]


# ----------------------------- pure-JAX reference -----------------------------
def reference(input_ids, p, label_name_ids):
    x = jnp.take(p["embed"], input_ids, axis=0)
    ridx = lax.broadcasted_iota(jnp.int32, (T, T), 0)
    cidx = lax.broadcasted_iota(jnp.int32, (T, T), 1)
    causal = cidx <= ridx

    def block(xb):
        h = _rms(xb, p["rms1"])
        q, k, v = h @ p["wq"], h @ p["wk"], h @ p["wv"]
        heads = []
        for hh in range(H):
            sl = slice(hh * HD, (hh + 1) * HD)
            qh = q[:, sl] * p["cos"] + _rotate_half(q[:, sl]) * p["sin"]
            kh = k[:, sl] * p["cos"] + _rotate_half(k[:, sl]) * p["sin"]
            s = (qh @ kh.T) / math.sqrt(HD)
            s = jnp.where(causal, s, -1e30)
            s = s - jnp.max(s, axis=-1, keepdims=True)
            pm = jnp.exp(s)
            pm = pm / jnp.sum(pm, axis=-1, keepdims=True)
            heads.append(pm @ v[:, sl])
        xb = xb + jnp.concatenate(heads, axis=-1) @ p["wo"]
        h2 = _rms(xb, p["rms2"])
        g, u = h2 @ p["wg"], h2 @ p["wu"]
        return xb + ((g * jax.nn.sigmoid(g)) * u) @ p["wd"]

    x = jnp.stack([block(x[b]) for b in range(B)], axis=0)
    logits = _rms(x, p["rmsf"]) @ p["wlm"]
    logp = jax.nn.log_softmax(logits, axis=-1)
    out = jnp.zeros((B, N_LABELS), jnp.float32)
    for i, ids in enumerate(label_name_ids):
        total = jnp.sum(logp[:, :, jnp.array(ids)], axis=-1)
        out = out.at[:, i].set(total[:, 0])
    return out


# ----------------------------- main -----------------------------
if __name__ == "__main__":
    key = jax.random.PRNGKey(0)
    ks = jax.random.split(key, 12)

    def init(k, shape, scale):
        return jax.random.normal(k, shape, jnp.float32) * scale

    # RoPE tables (per-head width for the reference)
    inv_freq = 1.0 / (10000.0 ** (jnp.arange(0, HD, 2, dtype=jnp.float32) / HD))
    ang = jnp.outer(jnp.arange(T, dtype=jnp.float32), inv_freq)      # (T, HD//2)
    cos_h = jnp.concatenate([jnp.cos(ang), jnp.cos(ang)], axis=-1)   # (T, HD)
    sin_h = jnp.concatenate([jnp.sin(ang), jnp.sin(ang)], axis=-1)

    params = {
        "embed": init(ks[0], (V, D), 0.02),
        "wq": init(ks[1], (D, D), D ** -0.5),
        "wk": init(ks[2], (D, D), D ** -0.5),
        "wv": init(ks[3], (D, D), D ** -0.5),
        "wo": init(ks[4], (D, D), D ** -0.5),
        "wg": init(ks[5], (D, F), D ** -0.5),
        "wu": init(ks[6], (D, F), D ** -0.5),
        "wd": init(ks[7], (F, D), F ** -0.5),
        "wlm": init(ks[8], (D, V), D ** -0.5),
        "rms1": jnp.ones((1, D), jnp.float32),
        "rms2": jnp.ones((1, D), jnp.float32),
        "rmsf": jnp.ones((1, D), jnp.float32),
        "cos": cos_h,
        "sin": sin_h,
    }

    # ---- host-side constants for the fused kernel ----
    # cos/sin tiled across heads and batch -> (BT, D)
    cos_full = jnp.tile(jnp.tile(cos_h, (1, H)), (B, 1))
    sin_full = jnp.tile(jnp.tile(sin_h, (1, H)), (B, 1))

    # +/-1 permutation matrix implementing per-head rotate_half:  x @ rot == rotate_half(x)
    rot_np = np.zeros((D, D), np.float32)
    for hh in range(H):
        base = hh * HD
        for j in range(HD // 2):
            rot_np[base + HD // 2 + j, base + j] = -1.0
            rot_np[base + j, base + HD // 2 + j] = 1.0
    rot = jnp.asarray(rot_np, jnp.bfloat16)

    # block-diagonal causal additive mask over the flattened (BT, BT) score matrix
    rows = np.arange(BT)
    same_seq = (rows[:, None] // T) == (rows[None, :] // T)
    causal_np = (rows[None, :] % T) <= (rows[:, None] % T)
    bias = jnp.asarray(np.where(same_seq & causal_np, 0.0, -1e30), jnp.float32)

    # multi-hot label-token count matrix, zero-padded to a lane-dense width of 128
    lmat_np = np.zeros((V, N_PAD), np.float32)
    for i, ids in enumerate(LABEL_NAME_IDS):
        for tok in ids:
            lmat_np[tok, i] += 1.0
    label_mat = jnp.asarray(lmat_np)

    consts = {"cos_full": cos_full, "sin_full": sin_full, "rot": rot,
              "bias": bias, "label_mat": label_mat}

    input_ids = jax.random.randint(ks[9], (B, T), 0, V, dtype=jnp.int32)

    run = jax.jit(llama_zero_shot_classifier)
    out = jax.block_until_ready(run(input_ids, params, consts))

    ref = jax.block_until_ready(reference(input_ids, params, LABEL_NAME_IDS))
    assert out.shape == (B, N_LABELS) and out.dtype == jnp.float32
    # bf16 MXU operands with f32 accumulation vs f32 reference
    assert jnp.allclose(out, ref, rtol=5e-2, atol=2e-1), (out, ref)

    print("KERNEL_OK")
</pallas_src>

<mosaic_0001>
module attributes {stable_mosaic.version = 11 : i64} {
  func.func @fused_classifier_kernel(%arg0: memref<16x64xf32, #tpu.memory_space<vmem>>, %arg1: memref<64x64xf32, #tpu.memory_space<vmem>>, %arg2: memref<64x64xf32, #tpu.memory_space<vmem>>, %arg3: memref<64x64xf32, #tpu.memory_space<vmem>>, %arg4: memref<64x64xf32, #tpu.memory_space<vmem>>, %arg5: memref<64x128xf32, #tpu.memory_space<vmem>>, %arg6: memref<64x128xf32, #tpu.memory_space<vmem>>, %arg7: memref<128x64xf32, #tpu.memory_space<vmem>>, %arg8: memref<64x512xf32, #tpu.memory_space<vmem>>, %arg9: memref<64x64xbf16, #tpu.memory_space<vmem>>, %arg10: memref<1x64xf32, #tpu.memory_space<vmem>>, %arg11: memref<1x64xf32, #tpu.memory_space<vmem>>, %arg12: memref<1x64xf32, #tpu.memory_space<vmem>>, %arg13: memref<16x64xf32, #tpu.memory_space<vmem>>, %arg14: memref<16x64xf32, #tpu.memory_space<vmem>>, %arg15: memref<16x16xf32, #tpu.memory_space<vmem>>, %arg16: memref<512x128xf32, #tpu.memory_space<vmem>>, %arg17: memref<2x128xf32, #tpu.memory_space<vmem>>) attributes {dimension_semantics = [], scalar_prefetch = 0 : i64, scratch_operands = 0 : i64, tpu.core_type = #tpu.core_type<tc>} {
    %c0 = arith.constant 0 : index
    %c0_0 = arith.constant 0 : index
    %0 = vector.load %arg0[%c0, %c0_0] : memref<16x64xf32, #tpu.memory_space<vmem>>, vector<16x64xf32>
    %c0_1 = arith.constant 0 : index
    %c0_2 = arith.constant 0 : index
    %1 = vector.load %arg13[%c0_1, %c0_2] : memref<16x64xf32, #tpu.memory_space<vmem>>, vector<16x64xf32>
    %c0_3 = arith.constant 0 : index
    %c0_4 = arith.constant 0 : index
    %2 = vector.load %arg14[%c0_3, %c0_4] : memref<16x64xf32, #tpu.memory_space<vmem>>, vector<16x64xf32>
    %c0_5 = arith.constant 0 : index
    %c0_6 = arith.constant 0 : index
    %3 = vector.load %arg9[%c0_5, %c0_6] : memref<64x64xbf16, #tpu.memory_space<vmem>>, vector<64x64xbf16>
    %c0_7 = arith.constant 0 : index
    %c0_8 = arith.constant 0 : index
    %4 = vector.load %arg15[%c0_7, %c0_8] : memref<16x16xf32, #tpu.memory_space<vmem>>, vector<16x16xf32>
    %c0_9 = arith.constant 0 : index
    %c0_10 = arith.constant 0 : index
    %5 = vector.load %arg10[%c0_9, %c0_10] : memref<1x64xf32, #tpu.memory_space<vmem>>, vector<1x64xf32>
    %6 = arith.mulf %0, %0 : vector<16x64xf32>
    %cst = arith.constant dense<0.000000e+00> : vector<16xf32>
    %7 = vector.multi_reduction <add>, %6, %cst [1] : vector<16x64xf32> to vector<16xf32>
    %8 = vector.shape_cast %7 : vector<16xf32> to vector<16x1xf32>
    %cst_11 = arith.constant 6.400000e+01 : f32
    %9 = vector.broadcast %cst_11 : f32 to vector<16x1xf32>
    %10 = arith.divf %8, %9 : vector<16x1xf32>
    %cst_12 = arith.constant 9.99999974E-6 : f32
    %11 = vector.broadcast %cst_12 : f32 to vector<16x1xf32>
    %12 = arith.addf %10, %11 : vector<16x1xf32>
    %13 = math.rsqrt %12 : vector<16x1xf32>
    %14 = vector.broadcast %13 : vector<16x1xf32> to vector<16x64xf32>
    %15 = arith.mulf %0, %14 : vector<16x64xf32>
    %16 = vector.broadcast %5 : vector<1x64xf32> to vector<16x64xf32>
    %17 = arith.mulf %15, %16 : vector<16x64xf32>
    %c0_13 = arith.constant 0 : index
    %c0_14 = arith.constant 0 : index
    %18 = vector.load %arg1[%c0_13, %c0_14] : memref<64x64xf32, #tpu.memory_space<vmem>>, vector<64x64xf32>
    %19 = arith.truncf %17 : vector<16x64xf32> to vector<16x64xbf16>
    %20 = arith.truncf %18 : vector<64x64xf32> to vector<64x64xbf16>
    %cst_15 = arith.constant dense<0.000000e+00> : vector<16x64xf32>
    %21 = tpu.matmul %19, %20, %cst_15 {dimension_numbers = #tpu.dot_dimension_numbers<[1], [0], [0], [1], [0, 0, 1, 1], [], []>} : vector<16x64xbf16>, vector<64x64xbf16>, vector<16x64xf32> -> vector<16x64xf32>
    %c0_16 = arith.constant 0 : index
    %c0_17 = arith.constant 0 : index
    %22 = vector.load %arg2[%c0_16, %c0_17] : memref<64x64xf32, #tpu.memory_space<vmem>>, vector<64x64xf32>
    %23 = arith.truncf %17 : vector<16x64xf32> to vector<16x64xbf16>
    %24 = arith.truncf %22 : vector<64x64xf32> to vector<64x64xbf16>
    %cst_18 = arith.constant dense<0.000000e+00> : vector<16x64xf32>
    %25 = tpu.matmul %23, %24, %cst_18 {dimension_numbers = #tpu.dot_dimension_numbers<[1], [0], [0], [1], [0, 0, 1, 1], [], []>} : vector<16x64xbf16>, vector<64x64xbf16>, vector<16x64xf32> -> vector<16x64xf32>
    %c0_19 = arith.constant 0 : index
    %c0_20 = arith.constant 0 : index
    %26 = vector.load %arg3[%c0_19, %c0_20] : memref<64x64xf32, #tpu.memory_space<vmem>>, vector<64x64xf32>
    %27 = arith.truncf %17 : vector<16x64xf32> to vector<16x64xbf16>
    %28 = arith.truncf %26 : vector<64x64xf32> to vector<64x64xbf16>
    %cst_21 = arith.constant dense<0.000000e+00> : vector<16x64xf32>
    %29 = tpu.matmul %27, %28, %cst_21 {dimension_numbers = #tpu.dot_dimension_numbers<[1], [0], [0], [1], [0, 0, 1, 1], [], []>} : vector<16x64xbf16>, vector<64x64xbf16>, vector<16x64xf32> -> vector<16x64xf32>
    %30 = arith.mulf %21, %1 : vector<16x64xf32>
    %31 = arith.truncf %21 : vector<16x64xf32> to vector<16x64xbf16>
    %cst_22 = arith.constant dense<0.000000e+00> : vector<16x64xf32>
    %32 = tpu.matmul %31, %3, %cst_22 {dimension_numbers = #tpu.dot_dimension_numbers<[1], [0], [0], [1], [0, 0, 1, 1], [], []>} : vector<16x64xbf16>, vector<64x64xbf16>, vector<16x64xf32> -> vector<16x64xf32>
    %33 = arith.mulf %32, %2 : vector<16x64xf32>
    %34 = arith.addf %30, %33 : vector<16x64xf32>
    %35 = arith.mulf %25, %1 : vector<16x64xf32>
    %36 = arith.truncf %25 : vector<16x64xf32> to vector<16x64xbf16>
    %cst_23 = arith.constant dense<0.000000e+00> : vector<16x64xf32>
    %37 = tpu.matmul %36, %3, %cst_23 {dimension_numbers = #tpu.dot_dimension_numbers<[1], [0], [0], [1], [0, 0, 1, 1], [], []>} : vector<16x64xbf16>, vector<64x64xbf16>, vector<16x64xf32> -> vector<16x64xf32>
    %38 = arith.mulf %37, %2 : vector<16x64xf32>
    %39 = arith.addf %35, %38 : vector<16x64xf32>
    %40 = vector.extract_strided_slice %34 {offsets = [0, 0], sizes = [16, 32], strides = [1, 1]} : vector<16x64xf32> to vector<16x32xf32>
    %41 = vector.extract_strided_slice %39 {offsets = [0, 0], sizes = [16, 32], strides = [1, 1]} : vector<16x64xf32> to vector<16x32xf32>
    %42 = arith.truncf %40 : vector<16x32xf32> to vector<16x32xbf16>
    %43 = arith.truncf %41 : vector<16x32xf32> to vector<16x32xbf16>
    %cst_24 = arith.constant dense<0.000000e+00> : vector<16x16xf32>
    %44 = tpu.matmul %42, %43, %cst_24 {dimension_numbers = #tpu.dot_dimension_numbers<[1], [1], [0], [0], [0, 0, 1, 0], [], []>} : vector<16x32xbf16>, vector<16x32xbf16>, vector<16x16xf32> -> vector<16x16xf32>
    %cst_25 = arith.constant 0.176776692 : f32
    %45 = vector.broadcast %cst_25 : f32 to vector<16x16xf32>
    %46 = arith.mulf %44, %45 : vector<16x16xf32>
    %47 = arith.addf %46, %4 : vector<16x16xf32>
    %cst_26 = arith.constant dense<0xFF800000> : vector<16xf32>
    %48 = vector.multi_reduction <maximumf>, %47, %cst_26 [1] : vector<16x16xf32> to vector<16xf32>
    %49 = vector.shape_cast %48 : vector<16xf32> to vector<16x1xf32>
    %50 = vector.broadcast %49 : vector<16x1xf32> to vector<16x16xf32>
    %51 = arith.subf %47, %50 : vector<16x16xf32>
    %52 = math.exp %51 : vector<16x16xf32>
    %cst_27 = arith.constant dense<0.000000e+00> : vector<16xf32>
    %53 = vector.multi_reduction <add>, %52, %cst_27 [1] : vector<16x16xf32> to vector<16xf32>
    %54 = vector.shape_cast %53 : vector<16xf32> to vector<16x1xf32>
    %55 = vector.broadcast %54 : vector<16x1xf32> to vector<16x16xf32>
    %56 = arith.divf %52, %55 : vector<16x16xf32>
    %57 = vector.extract_strided_slice %29 {offsets = [0, 0], sizes = [16, 32], strides = [1, 1]} : vector<16x64xf32> to vector<16x32xf32>
    %58 = arith.truncf %56 : vector<16x16xf32> to vector<16x16xbf16>
    %59 = arith.truncf %57 : vector<16x32xf32> to vector<16x32xbf16>
    %cst_28 = arith.constant dense<0.000000e+00> : vector<16x32xf32>
    %60 = tpu.matmul %58, %59, %cst_28 {dimension_numbers = #tpu.dot_dimension_numbers<[1], [0], [0], [1], [0, 0, 1, 1], [], []>} : vector<16x16xbf16>, vector<16x32xbf16>, vector<16x32xf32> -> vector<16x32xf32>
    %61 = vector.extract_strided_slice %34 {offsets = [0, 32], sizes = [16, 32], strides = [1, 1]} : vector<16x64xf32> to vector<16x32xf32>
    %62 = vector.extract_strided_slice %39 {offsets = [0, 32], sizes = [16, 32], strides = [1, 1]} : vector<16x64xf32> to vector<16x32xf32>
    %63 = arith.truncf %61 : vector<16x32xf32> to vector<16x32xbf16>
    %64 = arith.truncf %62 : vector<16x32xf32> to vector<16x32xbf16>
    %cst_29 = arith.constant dense<0.000000e+00> : vector<16x16xf32>
    %65 = tpu.matmul %63, %64, %cst_29 {dimension_numbers = #tpu.dot_dimension_numbers<[1], [1], [0], [0], [0, 0, 1, 0], [], []>} : vector<16x32xbf16>, vector<16x32xbf16>, vector<16x16xf32> -> vector<16x16xf32>
    %cst_30 = arith.constant 0.176776692 : f32
    %66 = vector.broadcast %cst_30 : f32 to vector<16x16xf32>
    %67 = arith.mulf %65, %66 : vector<16x16xf32>
    %68 = arith.addf %67, %4 : vector<16x16xf32>
    %cst_31 = arith.constant dense<0xFF800000> : vector<16xf32>
    %69 = vector.multi_reduction <maximumf>, %68, %cst_31 [1] : vector<16x16xf32> to vector<16xf32>
    %70 = vector.shape_cast %69 : vector<16xf32> to vector<16x1xf32>
    %71 = vector.broadcast %70 : vector<16x1xf32> to vector<16x16xf32>
    %72 = arith.subf %68, %71 : vector<16x16xf32>
    %73 = math.exp %72 : vector<16x16xf32>
    %cst_32 = arith.constant dense<0.000000e+00> : vector<16xf32>
    %74 = vector.multi_reduction <add>, %73, %cst_32 [1] : vector<16x16xf32> to vector<16xf32>
    %75 = vector.shape_cast %74 : vector<16xf32> to vector<16x1xf32>
    %76 = vector.broadcast %75 : vector<16x1xf32> to vector<16x16xf32>
    %77 = arith.divf %73, %76 : vector<16x16xf32>
    %78 = vector.extract_strided_slice %29 {offsets = [0, 32], sizes = [16, 32], strides = [1, 1]} : vector<16x64xf32> to vector<16x32xf32>
    %79 = arith.truncf %77 : vector<16x16xf32> to vector<16x16xbf16>
    %80 = arith.truncf %78 : vector<16x32xf32> to vector<16x32xbf16>
    %cst_33 = arith.constant dense<0.000000e+00> : vector<16x32xf32>
    %81 = tpu.matmul %79, %80, %cst_33 {dimension_numbers = #tpu.dot_dimension_numbers<[1], [0], [0], [1], [0, 0, 1, 1], [], []>} : vector<16x16xbf16>, vector<16x32xbf16>, vector<16x32xf32> -> vector<16x32xf32>
    %82 = tpu.concatenate %60, %81 in 1 : vector<16x32xf32>, vector<16x32xf32> -> vector<16x64xf32>
    %c0_34 = arith.constant 0 : index
    %c0_35 = arith.constant 0 : index
    %83 = vector.load %arg4[%c0_34, %c0_35] : memref<64x64xf32, #tpu.memory_space<vmem>>, vector<64x64xf32>
    %84 = arith.truncf %82 : vector<16x64xf32> to vector<16x64xbf16>
    %85 = arith.truncf %83 : vector<64x64xf32> to vector<64x64xbf16>
    %cst_36 = arith.constant dense<0.000000e+00> : vector<16x64xf32>
    %86 = tpu.matmul %84, %85, %cst_36 {dimension_numbers = #tpu.dot_dimension_numbers<[1], [0], [0], [1], [0, 0, 1, 1], [], []>} : vector<16x64xbf16>, vector<64x64xbf16>, vector<16x64xf32> -> vector<16x64xf32>
    %87 = arith.addf %0, %86 : vector<16x64xf32>
    %c0_37 = arith.constant 0 : index
    %c0_38 = arith.constant 0 : index
    %88 = vector.load %arg11[%c0_37, %c0_38] : memref<1x64xf32, #tpu.memory_space<vmem>>, vector<1x64xf32>
    %89 = arith.mulf %87, %87 : vector<16x64xf32>
    %cst_39 = arith.constant dense<0.000000e+00> : vector<16xf32>
    %90 = vector.multi_reduction <add>, %89, %cst_39 [1] : vector<16x64xf32> to vector<16xf32>
    %91 = vector.shape_cast %90 : vector<16xf32> to vector<16x1xf32>
    %cst_40 = arith.constant 6.400000e+01 : f32
    %92 = vector.broadcast %cst_40 : f32 to vector<16x1xf32>
    %93 = arith.divf %91, %92 : vector<16x1xf32>
    %cst_41 = arith.constant 9.99999974E-6 : f32
    %94 = vector.broadcast %cst_41 : f32 to vector<16x1xf32>
    %95 = arith.addf %93, %94 : vector<16x1xf32>
    %96 = math.rsqrt %95 : vector<16x1xf32>
    %97 = vector.broadcast %96 : vector<16x1xf32> to vector<16x64xf32>
    %98 = arith.mulf %87, %97 : vector<16x64xf32>
    %99 = vector.broadcast %88 : vector<1x64xf32> to vector<16x64xf32>
    %100 = arith.mulf %98, %99 : vector<16x64xf32>
    %c0_42 = arith.constant 0 : index
    %c0_43 = arith.constant 0 : index
    %101 = vector.load %arg5[%c0_42, %c0_43] : memref<64x128xf32, #tpu.memory_space<vmem>>, vector<64x128xf32>
    %102 = arith.truncf %100 : vector<16x64xf32> to vector<16x64xbf16>
    %103 = arith.truncf %101 : vector<64x128xf32> to vector<64x128xbf16>
    %cst_44 = arith.constant dense<0.000000e+00> : vector<16x128xf32>
    %104 = tpu.matmul %102, %103, %cst_44 {dimension_numbers = #tpu.dot_dimension_numbers<[1], [0], [0], [1], [0, 0, 1, 1], [], []>} : vector<16x64xbf16>, vector<64x128xbf16>, vector<16x128xf32> -> vector<16x128xf32>
    %c0_45 = arith.constant 0 : index
    %c0_46 = arith.constant 0 : index
    %105 = vector.load %arg6[%c0_45, %c0_46] : memref<64x128xf32, #tpu.memory_space<vmem>>, vector<64x128xf32>
    %106 = arith.truncf %100 : vector<16x64xf32> to vector<16x64xbf16>
    %107 = arith.truncf %105 : vector<64x128xf32> to vector<64x128xbf16>
    %cst_47 = arith.constant dense<0.000000e+00> : vector<16x128xf32>
    %108 = tpu.matmul %106, %107, %cst_47 {dimension_numbers = #tpu.dot_dimension_numbers<[1], [0], [0], [1], [0, 0, 1, 1], [], []>} : vector<16x64xbf16>, vector<64x128xbf16>, vector<16x128xf32> -> vector<16x128xf32>
    %109 = arith.negf %104 : vector<16x128xf32>
    %110 = math.exp %109 : vector<16x128xf32>
    %cst_48 = arith.constant 1.000000e+00 : f32
    %111 = vector.broadcast %cst_48 : f32 to vector<16x128xf32>
    %112 = arith.addf %111, %110 : vector<16x128xf32>
    %113 = arith.divf %111, %112 : vector<16x128xf32>
    %114 = arith.mulf %104, %113 : vector<16x128xf32>
    %115 = arith.mulf %114, %108 : vector<16x128xf32>
    %c0_49 = arith.constant 0 : index
    %c0_50 = arith.constant 0 : index
    %116 = vector.load %arg7[%c0_49, %c0_50] : memref<128x64xf32, #tpu.memory_space<vmem>>, vector<128x64xf32>
    %117 = arith.truncf %115 : vector<16x128xf32> to vector<16x128xbf16>
    %118 = arith.truncf %116 : vector<128x64xf32> to vector<128x64xbf16>
    %cst_51 = arith.constant dense<0.000000e+00> : vector<16x64xf32>
    %119 = tpu.matmul %117, %118, %cst_51 {dimension_numbers = #tpu.dot_dimension_numbers<[1], [0], [0], [1], [0, 0, 1, 1], [], []>} : vector<16x128xbf16>, vector<128x64xbf16>, vector<16x64xf32> -> vector<16x64xf32>
    %120 = arith.addf %87, %119 : vector<16x64xf32>
    %121 = vector.extract_strided_slice %120 {offsets = [0, 0], sizes = [1, 64], strides = [1, 1]} : vector<16x64xf32> to vector<1x64xf32>
    %122 = vector.extract_strided_slice %120 {offsets = [8, 0], sizes = [1, 64], strides = [1, 1]} : vector<16x64xf32> to vector<1x64xf32>
    %123 = tpu.concatenate %121, %122 in 0 : vector<1x64xf32>, vector<1x64xf32> -> vector<2x64xf32>
    %c0_52 = arith.constant 0 : index
    %c0_53 = arith.constant 0 : index
    %124 = vector.load %arg12[%c0_52, %c0_53] : memref<1x64xf32, #tpu.memory_space<vmem>>, vector<1x64xf32>
    %125 = arith.mulf %123, %123 : vector<2x64xf32>
    %cst_54 = arith.constant dense<0.000000e+00> : vector<2xf32>
    %126 = vector.multi_reduction <add>, %125, %cst_54 [1] : vector<2x64xf32> to vector<2xf32>
    %127 = vector.shape_cast %126 : vector<2xf32> to vector<2x1xf32>
    %cst_55 = arith.constant 6.400000e+01 : f32
    %128 = vector.broadcast %cst_55 : f32 to vector<2x1xf32>
    %129 = arith.divf %127, %128 : vector<2x1xf32>
    %cst_56 = arith.constant 9.99999974E-6 : f32
    %130 = vector.broadcast %cst_56 : f32 to vector<2x1xf32>
    %131 = arith.addf %129, %130 : vector<2x1xf32>
    %132 = math.rsqrt %131 : vector<2x1xf32>
    %133 = vector.broadcast %132 : vector<2x1xf32> to vector<2x64xf32>
    %134 = arith.mulf %123, %133 : vector<2x64xf32>
    %135 = vector.broadcast %124 : vector<1x64xf32> to vector<2x64xf32>
    %136 = arith.mulf %134, %135 : vector<2x64xf32>
    %c0_57 = arith.constant 0 : index
    %c0_58 = arith.constant 0 : index
    %137 = vector.load %arg8[%c0_57, %c0_58] : memref<64x512xf32, #tpu.memory_space<vmem>>, vector<64x512xf32>
    %138 = arith.truncf %136 : vector<2x64xf32> to vector<2x64xbf16>
    %139 = arith.truncf %137 : vector<64x512xf32> to vector<64x512xbf16>
    %cst_59 = arith.constant dense<0.000000e+00> : vector<2x512xf32>
    %140 = tpu.matmul %138, %139, %cst_59 {dimension_numbers = #tpu.dot_dimension_numbers<[1], [0], [0], [1], [0, 0, 1, 1], [], []>} : vector<2x64xbf16>, vector<64x512xbf16>, vector<2x512xf32> -> vector<2x512xf32>
    %cst_60 = arith.constant dense<0xFF800000> : vector<2xf32>
    %141 = vector.multi_reduction <maximumf>, %140, %cst_60 [1] : vector<2x512xf32> to vector<2xf32>
    %142 = vector.shape_cast %141 : vector<2xf32> to vector<2x1xf32>
    %143 = vector.broadcast %142 : vector<2x1xf32> to vector<2x512xf32>
    %144 = arith.subf %140, %143 : vector<2x512xf32>
    %145 = math.exp %144 : vector<2x512xf32>
    %cst_61 = arith.constant dense<0.000000e+00> : vector<2xf32>
    %146 = vector.multi_reduction <add>, %145, %cst_61 [1] : vector<2x512xf32> to vector<2xf32>
    %147 = vector.shape_cast %146 : vector<2xf32> to vector<2x1xf32>
    %148 = math.log %147 : vector<2x1xf32>
    %149 = arith.addf %148, %142 : vector<2x1xf32>
    %150 = vector.broadcast %149 : vector<2x1xf32> to vector<2x512xf32>
    %151 = arith.subf %140, %150 : vector<2x512xf32>
    %c0_62 = arith.constant 0 : index
    %c0_63 = arith.constant 0 : index
    %152 = vector.load %arg16[%c0_62, %c0_63] : memref<512x128xf32, #tpu.memory_space<vmem>>, vector<512x128xf32>
    %153 = arith.truncf %151 : vector<2x512xf32> to vector<2x512xbf16>
    %154 = arith.truncf %152 : vector<512x128xf32> to vector<512x128xbf16>
    %cst_64 = arith.constant dense<0.000000e+00> : vector<2x128xf32>
    %155 = tpu.matmul %153, %154, %cst_64 {dimension_numbers = #tpu.dot_dimension_numbers<[1], [0], [0], [1], [0, 0, 1, 1], [], []>} : vector<2x512xbf16>, vector<512x128xbf16>, vector<2x128xf32> -> vector<2x128xf32>
    %c0_65 = arith.constant 0 : index
    %c0_66 = arith.constant 0 : index
    %156 = vector.load %arg17[%c0_65, %c0_66] : memref<2x128xf32, #tpu.memory_space<vmem>>, vector<2x128xf32>
    tpu.vector_store %arg17[%c0_65, %c0_66], %155 {strides = array<i32>} : memref<2x128xf32, #tpu.memory_space<vmem>>, vector<2x128xf32>,
    return
  }
}

</mosaic_0001>

<llo_original>
// kernel: llama_zero_shot_classifier.1
$region0: #{llama_zero_shot_classifier.1}
  #allocation0 [shape = 'u32[]', space=smem, size = 0x4, offset = 0x4, fixed_abs, tag = 'smem constant byte address 0x4 - core index']
  #allocation1 [shape = 'u32[144,128]{1,0:T(1,128)}', space=vmem, size = 0x12000, scoped, tag = 'internal scratch']
  %s0 = inlined_call_operand.vmem [shape: f32[16,64], index: 0, kind: input, shape index: {}]
  %s1 = inlined_call_operand.vmem [shape: f32[64,64], index: 1, kind: input, shape index: {}]
  %s2 = inlined_call_operand.vmem [shape: f32[64,64], index: 2, kind: input, shape index: {}]
  %s3 = inlined_call_operand.vmem [shape: f32[64,64], index: 3, kind: input, shape index: {}]
  %s4 = inlined_call_operand.vmem [shape: f32[64,64], index: 4, kind: input, shape index: {}]
  %s5 = inlined_call_operand.vmem [shape: f32[64,128], index: 5, kind: input, shape index: {}]
  %s6 = inlined_call_operand.hbm [shape: f32[64,128], index: 6, kind: input, shape index: {}]
  %s7 = inlined_call_operand.vmem [shape: f32[128,64], index: 7, kind: input, shape index: {}]
  %s8 = inlined_call_operand.vmem [shape: f32[64,512], index: 8, kind: input, shape index: {}]
  %s9 = inlined_call_operand.vmem [shape: bf16[64,64], index: 9, kind: input, shape index: {}]
  %s10 = inlined_call_operand.vmem [shape: f32[1,64], index: 10, kind: input, shape index: {}]
  %s11 = inlined_call_operand.vmem [shape: f32[1,64], index: 11, kind: input, shape index: {}]
  %s12 = inlined_call_operand.vmem [shape: f32[1,64], index: 12, kind: input, shape index: {}]
  %s13 = inlined_call_operand.vmem [shape: f32[16,64], index: 13, kind: input, shape index: {}]
  %s14 = inlined_call_operand.hbm [shape: f32[16,64], index: 14, kind: input, shape index: {}]
  %s15 = inlined_call_operand.hbm [shape: f32[16,16], index: 15, kind: input, shape index: {}]
  %s16 = inlined_call_operand.vmem [shape: f32[512,128], index: 16, kind: input, shape index: {}]
  %s17 = inlined_call_operand.hbm [shape: f32[2,128], index: 17, kind: output, shape index: {}]
  %s18 = sld [smem:[#allocation0]]
  $region90: #{llama_zero_shot_classifier.1} parent=0
    _
  %s20 = ssub.s32 1, %s18
  %s21 = scalar_select 0, %s20, %s18
  $region1: #{llama_zero_shot_classifier.1} parent=0
    #allocation2 [shape = 'u8[32768]{0}', space=vmem, size = 0x8000, scoped, tag = 'input window, operand 6, single buffered']
    #allocation3 [shape = 's32[1]{0}', space=sflag, size = 0x4, scoped, tag = 'scoped memory for llama_zero_shot_classifier.1']
    #allocation4 [shape = 's32[1]{0}', space=sflag, size = 0x4, scoped, tag = 'scoped memory for llama_zero_shot_classifier.1']
    #allocation5 [shape = 'u8[8192]{0}', space=vmem, size = 0x2000, scoped, tag = 'input window, operand 14, single buffered']
    #allocation6 [shape = 's32[1]{0}', space=sflag, size = 0x4, scoped, tag = 'scoped memory for llama_zero_shot_classifier.1']
    #allocation7 [shape = 'u8[8192]{0}', space=vmem, size = 0x2000, scoped, tag = 'input window, operand 15, single buffered']
    #allocation8 [shape = 'u8[1024]{0}', space=vmem, size = 0x400, scoped, tag = 'output window, operand 0, single buffered']
    %22 = vsyncpa [#allocation3], 0
    %23 = vsyncpa [#allocation6], 0
    %24 = vsyncpa [#allocation4], 0
    // Predicated region
    $region2: #{llama_zero_shot_classifier.1} parent=1 // pred_check
      _
    $region3: #{llama_zero_shot_classifier.1} parent=1 // pred_check_branch
      %26 = sbr.rel (0) target = $region5
    $region4: #{llama_zero_shot_classifier.1} parent=1 // pred_region
      _
    $region5: #{llama_zero_shot_classifier.1} parent=1 // pred_fallthru
      _
    // Predicated region
    $region6: #{llama_zero_shot_classifier.1} parent=1 // pred_check
      _
    $region7: #{llama_zero_shot_classifier.1} parent=1 // pred_check_branch
      %28 = sbr.rel (0) target = $region9
    $region8: #{llama_zero_shot_classifier.1} parent=1 // pred_region
      _
    $region9: #{llama_zero_shot_classifier.1} parent=1 // pred_fallthru
      _
    // Predicated region
    $region10: #{llama_zero_shot_classifier.1} parent=1 // pred_check
      _
    $region11: #{llama_zero_shot_classifier.1} parent=1 // pred_check_branch
      %30 = sbr.rel (0) target = $region13
    $region12: #{llama_zero_shot_classifier.1} parent=1 // pred_region
      _
    $region13: #{llama_zero_shot_classifier.1} parent=1 // pred_fallthru
      _
    // Predicated region
    $region14: #{llama_zero_shot_classifier.1} parent=1 // pred_check
      _
    $region15: #{llama_zero_shot_classifier.1} parent=1 // pred_check_branch
      %32 = sbr.rel (0) target = $region17
    $region16: #{llama_zero_shot_classifier.1} parent=1 // pred_region
      _
    $region17: #{llama_zero_shot_classifier.1} parent=1 // pred_fallthru
      _
    // Predicated region
    $region18: #{llama_zero_shot_classifier.1} parent=1 // pred_check
      _
    $region19: #{llama_zero_shot_classifier.1} parent=1 // pred_check_branch
      %34 = sbr.rel (0) target = $region21
    $region20: #{llama_zero_shot_classifier.1} parent=1 // pred_region
      _
    $region21: #{llama_zero_shot_classifier.1} parent=1 // pred_fallthru
      _
    // Predicated region
    $region22: #{llama_zero_shot_classifier.1} parent=1 // pred_check
      _
    $region23: #{llama_zero_shot_classifier.1} parent=1 // pred_check_branch
      %36 = sbr.rel (0) target = $region25
    $region24: #{llama_zero_shot_classifier.1} parent=1 // pred_region
      _
    $region25: #{llama_zero_shot_classifier.1} parent=1 // pred_fallthru
      _
    // Predicated region
    $region26: #{llama_zero_shot_classifier.1} parent=1 // pred_check
      _
    $region27: #{llama_zero_shot_classifier.1} parent=1 // pred_check_branch
      %38 = sbr.rel (0) target = $region29
    $region28: #{llama_zero_shot_classifier.1} parent=1 // pred_region
      %s40 = ssub.s32 1024, 1024
      %41 = vsyncadd [#allocation3], %s40
      %s42 = sshll.u32 [#allocation2], 4
      %s43 = int_to_ptr.vmem [resolvable:$true] %s42
      %48 = dma.hbm_to_vmem [thread:$0]  %s6, 1024, %s43, [#allocation3], 128, 128, 8
    $region29: #{llama_zero_shot_classifier.1} parent=1 // pred_fallthru
      _
    // Predicated region
    $region30: #{llama_zero_shot_classifier.1} parent=1 // pred_check
      _
    $region31: #{llama_zero_shot_classifier.1} parent=1 // pred_check_branch
      %50 = sbr.rel (0) target = $region33
    $region32: #{llama_zero_shot_classifier.1} parent=1 // pred_region
      _
    $region33: #{llama_zero_shot_classifier.1} parent=1 // pred_fallthru
      _
    // Predicated region
    $region34: #{llama_zero_shot_classifier.1} parent=1 // pred_check
      _
    $region35: #{llama_zero_shot_classifier.1} parent=1 // pred_check_branch
      %52 = sbr.rel (0) target = $region37
    $region36: #{llama_zero_shot_classifier.1} parent=1 // pred_region
      _
    $region37: #{llama_zero_shot_classifier.1} parent=1 // pred_fallthru
      _
    // Predicated region
    $region38: #{llama_zero_shot_classifier.1} parent=1 // pred_check
      _
    $region39: #{llama_zero_shot_classifier.1} parent=1 // pred_check_branch
      %54 = sbr.rel (0) target = $region41
    $region40: #{llama_zero_shot_classifier.1} parent=1 // pred_region
      _
    $region41: #{llama_zero_shot_classifier.1} parent=1 // pred_fallthru
      _
    // Predicated region
    $region42: #{llama_zero_shot_classifier.1} parent=1 // pred_check
      _
    $region43: #{llama_zero_shot_classifier.1} parent=1 // pred_check_branch
      %56 = sbr.rel (0) target = $region45
    $region44: #{llama_zero_shot_classifier.1} parent=1 // pred_region
      _
    $region45: #{llama_zero_shot_classifier.1} parent=1 // pred_fallthru
      _
    // Predicated region
    $region46: #{llama_zero_shot_classifier.1} parent=1 // pred_check
      _
    $region47: #{llama_zero_shot_classifier.1} parent=1 // pred_check_branch
      %58 = sbr.rel (0) target = $region49
    $region48: #{llama_zero_shot_classifier.1} parent=1 // pred_region
      _
    $region49: #{llama_zero_shot_classifier.1} parent=1 // pred_fallthru
      _
    // Predicated region
    $region50: #{llama_zero_shot_classifier.1} parent=1 // pred_check
      _
    $region51: #{llama_zero_shot_classifier.1} parent=1 // pred_check_branch
      %60 = sbr.rel (0) target = $region53
    $region52: #{llama_zero_shot_classifier.1} parent=1 // pred_region
      _
    $region53: #{llama_zero_shot_classifier.1} parent=1 // pred_fallthru
      _
    // Predicated region
    $region54: #{llama_zero_shot_classifier.1} parent=1 // pred_check
      _
    $region55: #{llama_zero_shot_classifier.1} parent=1 // pred_check_branch
      %62 = sbr.rel (0) target = $region57
    $region56: #{llama_zero_shot_classifier.1} parent=1 // pred_region
      _
    $region57: #{llama_zero_shot_classifier.1} parent=1 // pred_fallthru
      _
    // Predicated region
    $region58: #{llama_zero_shot_classifier.1} parent=1 // pred_check
      _
    $region59: #{llama_zero_shot_classifier.1} parent=1 // pred_check_branch
      %64 = sbr.rel (0) target = $region61
    $region60: #{llama_zero_shot_classifier.1} parent=1 // pred_region
      %s66 = ssub.s32 256, 256
      %67 = vsyncadd [#allocation6], %s66
      %s68 = sshll.u32 [#allocation5], 4
      %s69 = int_to_ptr.vmem [resolvable:$true] %s68
      %74 = dma.hbm_to_vmem [thread:$0]  %s14, 256, %s69, [#allocation6], 128, 128, 8
    $region61: #{llama_zero_shot_classifier.1} parent=1 // pred_fallthru
      _
    // Predicated region
    $region62: #{llama_zero_shot_classifier.1} parent=1 // pred_check
      _
    $region63: #{llama_zero_shot_classifier.1} parent=1 // pred_check_branch
      %76 = sbr.rel (0) target = $region65
    $region64: #{llama_zero_shot_classifier.1} parent=1 // pred_region
      %s78 = ssub.s32 256, 256
      %79 = vsyncadd [#allocation6], %s78
      %s80 = sshll.u32 [#allocation7], 4
      %s81 = int_to_ptr.vmem [resolvable:$true] %s80
      %86 = dma.hbm_to_vmem [thread:$0]  %s15, 256, %s81, [#allocation6], 128, 128, 8
    $region65: #{llama_zero_shot_classifier.1} parent=1 // pred_fallthru
      _
    // Predicated region
    $region66: #{llama_zero_shot_classifier.1} parent=1 // pred_check
      _
    $region67: #{llama_zero_shot_classifier.1} parent=1 // pred_check_branch
      %88 = sbr.rel (0) target = $region69
    $region68: #{llama_zero_shot_classifier.1} parent=1 // pred_region
      _
    $region69: #{llama_zero_shot_classifier.1} parent=1 // pred_fallthru
      _
    // Predicated region
    $region70: #{llama_zero_shot_classifier.1} parent=1 // pred_check
      _
    $region71: #{llama_zero_shot_classifier.1} parent=1 // pred_check_branch
      %90 = sbr.rel (0) target = $region73
    $region72: #{llama_zero_shot_classifier.1} parent=1 // pred_region
      %91 = dma.done [#allocation3], 1024
    $region73: #{llama_zero_shot_classifier.1} parent=1 // pred_fallthru
      _
    // Predicated region
    $region74: #{llama_zero_shot_classifier.1} parent=1 // pred_check
      _
    $region75: #{llama_zero_shot_classifier.1} parent=1 // pred_check_branch
      %93 = sbr.rel (0) target = $region77
    $region76: #{llama_zero_shot_classifier.1} parent=1 // pred_region
      %94 = dma.done [#allocation6], 256
    $region77: #{llama_zero_shot_classifier.1} parent=1 // pred_fallthru
      _
    // Predicated region
    $region78: #{llama_zero_shot_classifier.1} parent=1 // pred_check
      _
    $region79: #{llama_zero_shot_classifier.1} parent=1 // pred_check_branch
      %96 = sbr.rel (0) target = $region81
    $region80: #{llama_zero_shot_classifier.1} parent=1 // pred_region
      %97 = dma.done [#allocation6], 256
    $region81: #{llama_zero_shot_classifier.1} parent=1 // pred_fallthru
      _
    %v99 = vld [vmem:[%s0] sm:$0xff]
    %v100 = vld [vmem:[%s0 + $0x8] sm:$0xff]
    %v101 = vld [vmem:[%s13] sm:$0xff]
    %v102 = vld [vmem:[%s13 + $0x8] sm:$0xff]
    %v103 = vld [vmem:[#allocation5] sm:$0xff]
    %v104 = vld [vmem:[#allocation5 + $0x8] sm:$0xff]
    %v105 = vld [vmem:[%s9] sm:$0xf]
    %v106 = vld [vmem:[%s9 + $0x4] sm:$0xf]
    %v107 = vld [vmem:[%s9 + $0x8] sm:$0xf]
    %v108 = vld [vmem:[%s9 + $0xc] sm:$0xf]
    %v109 = vld [vmem:[%s9 + $0x10] sm:$0xf]
    %v110 = vld [vmem:[%s9 + $0x14] sm:$0xf]
    %v111 = vld [vmem:[%s9 + $0x18] sm:$0xf]
    %v112 = vld [vmem:[%s9 + $0x1c] sm:$0xf]
    %v113 = vld [vmem:[#allocation7] sm:$0xff]
    %v114 = vld [vmem:[#allocation7 + $0x8] sm:$0xff]
    %v115 = vld [vmem:[%s10] sm:$0x1]
    %v116 = vmul.f32 %v99, %v99
    %v117 = vmul.f32 %v100, %v100
    %vm118 = vcmask 523264
    %v119 = vsel %vm118, %v116, 0.0
    %120 = vadd.xlane.f32.xlu0 %v119
    %v121 = vpop.xlane.xlu0 %120
    %v122 = vsel %vm118, %v117, 0.0
    %123 = vadd.xlane.f32.xlu0 %v122
    %v124 = vpop.xlane.xlu0 %123
    %v125 = vrcp.pop 64.0
    %v126 = vmul.f32 %v121, %v125
    %v127 = vmul.f32 %v124, %v125
    %v128 = vadd.f32 %v126, 1e-05
    %v129 = vadd.f32 %v127, 1e-05
    %v130 = vrsqrt.pop %v128
    %v131 = vrsqrt.pop %v129
    %v132 = vmul.f32 %v99, %v130
    %v133 = vmul.f32 %v100, %v131
    %v135 = vlaneseq
    %v136 = vshrl.u32 %v135, 7
    %v137 = vsub.s32 0, %v136
    %v138 = vrot.slane %v115, %v137
    %v140 = vmul.f32 %v132, %v138
    %v141 = vmul.f32 %v133, %v138
    %v142 = vld [vmem:[%s1] sm:$0xff]
    %v143 = vld [vmem:[%s1 + $0x8] sm:$0xff]
    %v144 = vld [vmem:[%s1 + $0x10] sm:$0xff]
    %v145 = vld [vmem:[%s1 + $0x18] sm:$0xff]
    %v146 = vld [vmem:[%s1 + $0x20] sm:$0xff]
    %v147 = vld [vmem:[%s1 + $0x28] sm:$0xff]
    %v148 = vld [vmem:[%s1 + $0x30] sm:$0xff]
    %v149 = vld [vmem:[%s1 + $0x38] sm:$0xff]
    %v150 = vpack.c.bf16 %v141, %v140
    %v151 = vpack.c.bf16 %v143, %v142
    %v152 = vpack.c.bf16 %v145, %v144
    %v153 = vpack.c.bf16 %v147, %v146
    %v154 = vpack.c.bf16 %v149, %v148
    %v156 = vsel %vm118, %v150, 0
    %158 = vmatprep.subr.bf16.mxu0 0
    %159 = vmatpush1.bf16.msra.mxu0 %v151
    %160 = vmatprep.subr.bf16.mxu0 0
    %161 = vmatpush1.bf16.msra.mxu0 %v152
    %162 = vmatprep.subr.bf16.mxu0 0
    %163 = vmatpush1.bf16.msra.mxu0 %v153
    %164 = vmatprep.subr.bf16.mxu0 0
    %165 = vmatpush1.bf16.msra.mxu0 %v154
    %166 = vmatprep.subr.bf16.mxu0 0
    %167 = vmatpush1.bf16.msra.mxu0 0
    %168 = vmatprep.subr.bf16.mxu0 0
    %169 = vmatpush1.bf16.msra.mxu0 0
    %170 = vmatprep.subr.bf16.mxu0 0
    %171 = vmatpush1.bf16.msra.mxu0 0
    %172 = vmatprep.subr.bf16.mxu0 0
    %173 = vmatpush1.bf16.msra.mxu0 0
    %174 = vmatprep.subr.bf16.mxu0 0
    %175 = vmatpush1.bf16.msra.mxu0 0
    %176 = vmatprep.subr.bf16.mxu0 0
    %177 = vmatpush1.bf16.msra.mxu0 0
    %178 = vmatprep.subr.bf16.mxu0 0
    %179 = vmatpush1.bf16.msra.mxu0 0
    %180 = vmatprep.subr.bf16.mxu0 0
    %181 = vmatpush1.bf16.msra.mxu0 0
    %182 = vmatprep.subr.bf16.mxu0 0
    %183 = vmatpush1.bf16.msra.mxu0 0
    %184 = vmatprep.subr.bf16.mxu0 0
    %185 = vmatpush1.bf16.msra.mxu0 0
    %186 = vmatprep.subr.bf16.mxu0 0
    %187 = vmatpush1.bf16.msra.mxu0 0
    %188 = vmatprep.subr.bf16.mxu0 0
    %189 = vmatpush1.bf16.msra.mxu0 0
    %190 = vmatprep.mubr.bf16.mxu0 0
    %191 = vmatmul.mubr.bf16.gmra.mrb[0].mxu0 %v156
    %v192 = vpop.f32.mrb[0].mxu0
    %v193 = vadd.f32 0.0, %v192
    %v194 = vpop.f32.mrb[0].mxu0
    %v195 = vpop.f32.mrb[0].mxu0
    %v196 = vadd.f32 0.0, %v195
    %v197 = vpop.f32.mrb[0].mxu0
    %198 = vdwg.mxu0
    %v199 = vld [vmem:[%s2] sm:$0xff]
    %v200 = vld [vmem:[%s2 + $0x8] sm:$0xff]
    %v201 = vld [vmem:[%s2 + $0x10] sm:$0xff]
    %v202 = vld [vmem:[%s2 + $0x18] sm:$0xff]
    %v203 = vld [vmem:[%s2 + $0x20] sm:$0xff]
    %v204 = vld [vmem:[%s2 + $0x28] sm:$0xff]
    %v205 = vld [vmem:[%s2 + $0x30] sm:$0xff]
    %v206 = vld [vmem:[%s2 + $0x38] sm:$0xff]
    %v207 = vpack.c.bf16 %v200, %v199
    %v208 = vpack.c.bf16 %v202, %v201
    %v209 = vpack.c.bf16 %v204, %v203
    %v210 = vpack.c.bf16 %v206, %v205
    %211 = vmatprep.subr.bf16.mxu0 0
    %212 = vmatpush1.bf16.msra.mxu0 %v207
    %213 = vmatprep.subr.bf16.mxu0 0
    %214 = vmatpush1.bf16.msra.mxu0 %v208
    %215 = vmatprep.subr.bf16.mxu0 0
    %216 = vmatpush1.bf16.msra.mxu0 %v209
    %217 = vmatprep.subr.bf16.mxu0 0
    %218 = vmatpush1.bf16.msra.mxu0 %v210
    %219 = vmatprep.subr.bf16.mxu0 0
    %220 = vmatpush1.bf16.msra.mxu0 0
    %221 = vmatprep.subr.bf16.mxu0 0
    %222 = vmatpush1.bf16.msra.mxu0 0
    %223 = vmatprep.subr.bf16.mxu0 0
    %224 = vmatpush1.bf16.msra.mxu0 0
    %225 = vmatprep.subr.bf16.mxu0 0
    %226 = vmatpush1.bf16.msra.mxu0 0
    %227 = vmatprep.subr.bf16.mxu0 0
    %228 = vmatpush1.bf16.msra.mxu0 0
    %229 = vmatprep.subr.bf16.mxu0 0
    %230 = vmatpush1.bf16.msra.mxu0 0
    %231 = vmatprep.subr.bf16.mxu0 0
    %232 = vmatpush1.bf16.msra.mxu0 0
    %233 = vmatprep.subr.bf16.mxu0 0
    %234 = vmatpush1.bf16.msra.mxu0 0
    %235 = vmatprep.subr.bf16.mxu0 0
    %236 = vmatpush1.bf16.msra.mxu0 0
    %237 = vmatprep.subr.bf16.mxu0 0
    %238 = vmatpush1.bf16.msra.mxu0 0
    %239 = vmatprep.subr.bf16.mxu0 0
    %240 = vmatpush1.bf16.msra.mxu0 0
    %241 = vmatprep.subr.bf16.mxu0 0
    %242 = vmatpush1.bf16.msra.mxu0 0
    %243 = vmatprep.mubr.bf16.mxu0 0
    %244 = vmatmul.mubr.bf16.gmra.mrb[0].mxu0 %v156
    %v245 = vpop.f32.mrb[0].mxu0
    %v246 = vadd.f32 0.0, %v245
    %v247 = vpop.f32.mrb[0].mxu0
    %v248 = vpop.f32.mrb[0].mxu0
    %v249 = vadd.f32 0.0, %v248
    %v250 = vpop.f32.mrb[0].mxu0
    %251 = vdwg.mxu0
    %v252 = vld [vmem:[%s3] sm:$0xff]
    %v253 = vld [vmem:[%s3 + $0x8] sm:$0xff]
    %v254 = vld [vmem:[%s3 + $0x10] sm:$0xff]
    %v255 = vld [vmem:[%s3 + $0x18] sm:$0xff]
    %v256 = vld [vmem:[%s3 + $0x20] sm:$0xff]
    %v257 = vld [vmem:[%s3 + $0x28] sm:$0xff]
    %v258 = vld [vmem:[%s3 + $0x30] sm:$0xff]
    %v259 = vld [vmem:[%s3 + $0x38] sm:$0xff]
    %v260 = vpack.c.bf16 %v253, %v252
    %v261 = vpack.c.bf16 %v255, %v254
    %v262 = vpack.c.bf16 %v257, %v256
    %v263 = vpack.c.bf16 %v259, %v258
    %264 = vmatprep.subr.bf16.mxu0 0
    %265 = vmatpush1.bf16.msra.mxu0 %v260
    %266 = vmatprep.subr.bf16.mxu0 0
    %267 = vmatpush1.bf16.msra.mxu0 %v261
    %268 = vmatprep.subr.bf16.mxu0 0
    %269 = vmatpush1.bf16.msra.mxu0 %v262
    %270 = vmatprep.subr.bf16.mxu0 0
    %271 = vmatpush1.bf16.msra.mxu0 %v263
    %272 = vmatprep.subr.bf16.mxu0 0
    %273 = vmatpush1.bf16.msra.mxu0 0
    %274 = vmatprep.subr.bf16.mxu0 0
    %275 = vmatpush1.bf16.msra.mxu0 0
    %276 = vmatprep.subr.bf16.mxu0 0
    %277 = vmatpush1.bf16.msra.mxu0 0
    %278 = vmatprep.subr.bf16.mxu0 0
    %279 = vmatpush1.bf16.msra.mxu0 0
    %280 = vmatprep.subr.bf16.mxu0 0
    %281 = vmatpush1.bf16.msra.mxu0 0
    %282 = vmatprep.subr.bf16.mxu0 0
    %283 = vmatpush1.bf16.msra.mxu0 0
    %284 = vmatprep.subr.bf16.mxu0 0
    %285 = vmatpush1.bf16.msra.mxu0 0
    %286 = vmatprep.subr.bf16.mxu0 0
    %287 = vmatpush1.bf16.msra.mxu0 0
    %288 = vmatprep.subr.bf16.mxu0 0
    %289 = vmatpush1.bf16.msra.mxu0 0
    %290 = vmatprep.subr.bf16.mxu0 0
    %291 = vmatpush1.bf16.msra.mxu0 0
    %292 = vmatprep.subr.bf16.mxu0 0
    %293 = vmatpush1.bf16.msra.mxu0 0
    %294 = vmatprep.subr.bf16.mxu0 0
    %295 = vmatpush1.bf16.msra.mxu0 0
    %296 = vmatprep.mubr.bf16.mxu0 0
    %297 = vmatmul.mubr.bf16.gmra.mrb[0].mxu0 %v156
    %v298 = vpop.f32.mrb[0].mxu0
    %v299 = vadd.f32 0.0, %v298
    %v300 = vpop.f32.mrb[0].mxu0
    %v301 = vpop.f32.mrb[0].mxu0
    %v302 = vadd.f32 0.0, %v301
    %v303 = vpop.f32.mrb[0].mxu0
    %304 = vdwg.mxu0
    %v305 = vmul.f32 %v193, %v101
    %v306 = vmul.f32 %v196, %v102
    %v307 = vpack.c.bf16 %v196, %v193
    %v316 = vunpack.c.l.b16 %v105
    %v317 = vunpack.c.l.b16 %v106
    %v318 = vunpack.c.l.b16 %v107
    %v319 = vunpack.c.l.b16 %v108
    %v320 = vunpack.c.l.b16 %v109
    %v321 = vunpack.c.l.b16 %v110
    %v322 = vunpack.c.l.b16 %v111
    %v323 = vunpack.c.l.b16 %v112
    %v324 = vpack.c.b16 %v317, %v316
    %v325 = vpack.c.b16 %v319, %v318
    %v326 = vpack.c.b16 %v321, %v320
    %v327 = vpack.c.b16 %v323, %v322
    %v333 = vsel %vm118, %v307, 0
    %335 = vmatprep.subr.bf16.mxu0 0
    %336 = vmatpush1.bf16.msra.mxu0 %v324
    %337 = vmatprep.subr.bf16.mxu0 0
    %338 = vmatpush1.bf16.msra.mxu0 %v325
    %339 = vmatprep.subr.bf16.mxu0 0
    %340 = vmatpush1.bf16.msra.mxu0 %v326
    %341 = vmatprep.subr.bf16.mxu0 0
    %342 = vmatpush1.bf16.msra.mxu0 %v327
    %343 = vmatprep.subr.bf16.mxu0 0
    %344 = vmatpush1.bf16.msra.mxu0 0
    %345 = vmatprep.subr.bf16.mxu0 0
    %346 = vmatpush1.bf16.msra.mxu0 0
    %347 = vmatprep.subr.bf16.mxu0 0
    %348 = vmatpush1.bf16.msra.mxu0 0
    %349 = vmatprep.subr.bf16.mxu0 0
    %350 = vmatpush1.bf16.msra.mxu0 0
    %351 = vmatprep.subr.bf16.mxu0 0
    %352 = vmatpush1.bf16.msra.mxu0 0
    %353 = vmatprep.subr.bf16.mxu0 0
    %354 = vmatpush1.bf16.msra.mxu0 0
    %355 = vmatprep.subr.bf16.mxu0 0
    %356 = vmatpush1.bf16.msra.mxu0 0
    %357 = vmatprep.subr.bf16.mxu0 0
    %358 = vmatpush1.bf16.msra.mxu0 0
    %359 = vmatprep.subr.bf16.mxu0 0
    %360 = vmatpush1.bf16.msra.mxu0 0
    %361 = vmatprep.subr.bf16.mxu0 0
    %362 = vmatpush1.bf16.msra.mxu0 0
    %363 = vmatprep.subr.bf16.mxu0 0
    %364 = vmatpush1.bf16.msra.mxu0 0
    %365 = vmatprep.subr.bf16.mxu0 0
    %366 = vmatpush1.bf16.msra.mxu0 0
    %367 = vmatprep.mubr.bf16.mxu0 0
    %368 = vmatmul.mubr.bf16.gmra.mrb[0].mxu0 %v333
    %v369 = vpop.f32.mrb[0].mxu0
    %v370 = vadd.f32 0.0, %v369
    %v371 = vpop.f32.mrb[0].mxu0
    %v372 = vpop.f32.mrb[0].mxu0
    %v373 = vadd.f32 0.0, %v372
    %v374 = vpop.f32.mrb[0].mxu0
    %375 = vdwg.mxu0
    %v376 = vmul.f32 %v370, %v103
    %v377 = vmul.f32 %v373, %v104
    %v378 = vadd.f32 %v305, %v376
    %v379 = vadd.f32 %v306, %v377
    %v380 = vmul.f32 %v246, %v101
    %v381 = vmul.f32 %v249, %v102
    %v382 = vpack.c.bf16 %v249, %v246
    %v384 = vsel %vm118, %v382, 0
    %386 = vmatprep.subr.bf16.mxu0 0
    %387 = vmatpush1.bf16.msra.mxu0 %v324
    %388 = vmatprep.subr.bf16.mxu0 0
    %389 = vmatpush1.bf16.msra.mxu0 %v325
    %390 = vmatprep.subr.bf16.mxu0 0
    %391 = vmatpush1.bf16.msra.mxu0 %v326
    %392 = vmatprep.subr.bf16.mxu0 0
    %393 = vmatpush1.bf16.msra.mxu0 %v327
    %394 = vmatprep.subr.bf16.mxu0 0
    %395 = vmatpush1.bf16.msra.mxu0 0
    %396 = vmatprep.subr.bf16.mxu0 0
    %397 = vmatpush1.bf16.msra.mxu0 0
    %398 = vmatprep.subr.bf16.mxu0 0
    %399 = vmatpush1.bf16.msra.mxu0 0
    %400 = vmatprep.subr.bf16.mxu0 0
    %401 = vmatpush1.bf16.msra.mxu0 0
    %402 = vmatprep.subr.bf16.mxu0 0
    %403 = vmatpush1.bf16.msra.mxu0 0
    %404 = vmatprep.subr.bf16.mxu0 0
    %405 = vmatpush1.bf16.msra.mxu0 0
    %406 = vmatprep.subr.bf16.mxu0 0
    %407 = vmatpush1.bf16.msra.mxu0 0
    %408 = vmatprep.subr.bf16.mxu0 0
    %409 = vmatpush1.bf16.msra.mxu0 0
    %410 = vmatprep.subr.bf16.mxu0 0
    %411 = vmatpush1.bf16.msra.mxu0 0
    %412 = vmatprep.subr.bf16.mxu0 0
    %413 = vmatpush1.bf16.msra.mxu0 0
    %414 = vmatprep.subr.bf16.mxu0 0
    %415 = vmatpush1.bf16.msra.mxu0 0
    %416 = vmatprep.subr.bf16.mxu0 0
    %417 = vmatpush1.bf16.msra.mxu0 0
    %418 = vmatprep.mubr.bf16.mxu0 0
    %419 = vmatmul.mubr.bf16.gmra.mrb[0].mxu0 %v384
    %v420 = vpop.f32.mrb[0].mxu0
    %v421 = vadd.f32 0.0, %v420
    %v422 = vpop.f32.mrb[0].mxu0
    %v423 = vpop.f32.mrb[0].mxu0
    %v424 = vadd.f32 0.0, %v423
    %v425 = vpop.f32.mrb[0].mxu0
    %426 = vdwg.mxu0
    %v427 = vmul.f32 %v421, %v103
    %v428 = vmul.f32 %v424, %v104
    %v429 = vadd.f32 %v380, %v427
    %v430 = vadd.f32 %v381, %v428
    %v431 = vpack.c.bf16 %v379, %v378
    %v432 = vpack.c.bf16 %v430, %v429
    %vm433 = vcmask 261120
    %v435 = vsel %vm433, %v431, 0
    %v438 = vsel %vm433, %v432, 0
    %440 = vmatprep.subr.bf16.mxu0 0
    %441 = vmatpush1.bf16.xpose.msra.mxu0 %v438
    %442 = vmatprep.subr.bf16.mxu0 0
    %443 = vmatpush1.bf16.xpose.msra.mxu0 0
    %444 = vmatprep.subr.bf16.mxu0 0
    %445 = vmatpush1.bf16.xpose.msra.mxu0 0
    %446 = vmatprep.subr.bf16.mxu0 0
    %447 = vmatpush1.bf16.xpose.msra.mxu0 0
    %448 = vmatprep.subr.bf16.mxu0 0
    %449 = vmatpush1.bf16.xpose.msra.mxu0 0
    %450 = vmatprep.subr.bf16.mxu0 0
    %451 = vmatpush1.bf16.xpose.msra.mxu0 0
    %452 = vmatprep.subr.bf16.mxu0 0
    %453 = vmatpush1.bf16.xpose.msra.mxu0 0
    %454 = vmatprep.subr.bf16.mxu0 0
    %455 = vmatpush1.bf16.xpose.msra.mxu0 0
    %456 = vmatprep.subr.bf16.mxu0 0
    %457 = vmatpush1.bf16.xpose.msra.mxu0 0
    %458 = vmatprep.subr.bf16.mxu0 0
    %459 = vmatpush1.bf16.xpose.msra.mxu0 0
    %460 = vmatprep.subr.bf16.mxu0 0
    %461 = vmatpush1.bf16.xpose.msra.mxu0 0
    %462 = vmatprep.subr.bf16.mxu0 0
    %463 = vmatpush1.bf16.xpose.msra.mxu0 0
    %464 = vmatprep.subr.bf16.mxu0 0
    %465 = vmatpush1.bf16.xpose.msra.mxu0 0
    %466 = vmatprep.subr.bf16.mxu0 0
    %467 = vmatpush1.bf16.xpose.msra.mxu0 0
    %468 = vmatprep.subr.bf16.mxu0 0
    %469 = vmatpush1.bf16.xpose.msra.mxu0 0
    %470 = vmatprep.subr.bf16.mxu0 0
    %471 = vmatpush1.bf16.xpose.msra.mxu0 0
    %472 = vmatprep.mubr.bf16.mxu0 0
    %473 = vmatmul.mubr.bf16.gmra.mrb[0].mxu0 %v435
    %v474 = vpop.f32.mrb[0].mxu0
    %v475 = vadd.f32 0.0, %v474
    %v476 = vpop.f32.mrb[0].mxu0
    %v477 = vpop.f32.mrb[0].mxu0
    %v478 = vadd.f32 0.0, %v477
    %v479 = vpop.f32.mrb[0].mxu0
    %480 = vdwg.mxu0
    %v481 = vmul.f32 %v475, 0.17677669
    %v482 = vmul.f32 %v478, 0.17677669
    %v483 = vadd.f32 %v481, %v113
    %v484 = vadd.f32 %v482, %v114
    %vm485 = vcmask 130048
    %v486 = vsel %vm485, %v483, -inf
    %487 = vmax.xlane.f32.xlu0 %v486
    %v488 = vpop.xlane.xlu0 %487
    %v489 = vsel %vm485, %v484, -inf
    %490 = vmax.xlane.f32.xlu0 %v489
    %v491 = vpop.xlane.xlu0 %490
    %v492 = vsub.f32 %v483, %v488
    %v493 = vsub.f32 %v484, %v491
    %v494 = vmul.f32 %v492, 1.442695
    %v495 = vpow.pop %v494
    %v496 = vmul.f32 %v493, 1.442695
    %v497 = vpow.pop %v496
    %v498 = vsel %vm485, %v495, 0.0
    %499 = vadd.xlane.f32.xlu0 %v498
    %v500 = vpop.xlane.xlu0 %499
    %v501 = vsel %vm485, %v497, 0.0
    %502 = vadd.xlane.f32.xlu0 %v501
    %v503 = vpop.xlane.xlu0 %502
    %v504 = vrcp.pop %v500
    %v505 = vmul.f32 %v495, %v504
    %v506 = vrcp.pop %v503
    %v507 = vmul.f32 %v497, %v506
    %v508 = vpack.c.bf16 %v507, %v505
    %v509 = vpack.c.bf16 %v302, %v299
    %v511 = vsel %vm485, %v508, 0
    %513 = vmatprep.subr.bf16.mxu0 0
    %514 = vmatpush1.bf16.msra.mxu0 %v509
    %515 = vmatprep.subr.bf16.mxu0 0
    %516 = vmatpush1.bf16.msra.mxu0 0
    %517 = vmatprep.subr.bf16.mxu0 0
    %518 = vmatpush1.bf16.msra.mxu0 0
    %519 = vmatprep.subr.bf16.mxu0 0
    %520 = vmatpush1.bf16.msra.mxu0 0
    %521 = vmatprep.subr.bf16.mxu0 0
    %522 = vmatpush1.bf16.msra.mxu0 0
    %523 = vmatprep.subr.bf16.mxu0 0
    %524 = vmatpush1.bf16.msra.mxu0 0
    %525 = vmatprep.subr.bf16.mxu0 0
    %526 = vmatpush1.bf16.msra.mxu0 0
    %527 = vmatprep.subr.bf16.mxu0 0
    %528 = vmatpush1.bf16.msra.mxu0 0
    %529 = vmatprep.subr.bf16.mxu0 0
    %530 = vmatpush1.bf16.msra.mxu0 0
    %531 = vmatprep.subr.bf16.mxu0 0
    %532 = vmatpush1.bf16.msra.mxu0 0
    %533 = vmatprep.subr.bf16.mxu0 0
    %534 = vmatpush1.bf16.msra.mxu0 0
    %535 = vmatprep.subr.bf16.mxu0 0
    %536 = vmatpush1.bf16.msra.mxu0 0
    %537 = vmatprep.subr.bf16.mxu0 0
    %538 = vmatpush1.bf16.msra.mxu0 0
    %539 = vmatprep.subr.bf16.mxu0 0
    %540 = vmatpush1.bf16.msra.mxu0 0
    %541 = vmatprep.subr.bf16.mxu0 0
    %542 = vmatpush1.bf16.msra.mxu0 0
    %543 = vmatprep.subr.bf16.mxu0 0
    %544 = vmatpush1.bf16.msra.mxu0 0
    %545 = vmatprep.mubr.bf16.mxu0 0
    %546 = vmatmul.mubr.bf16.gmra.mrb[0].mxu0 %v511
    %v547 = vpop.f32.mrb[0].mxu0
    %v548 = vadd.f32 0.0, %v547
    %v549 = vpop.f32.mrb[0].mxu0
    %v550 = vpop.f32.mrb[0].mxu0
    %v551 = vadd.f32 0.0, %v550
    %v552 = vpop.f32.mrb[0].mxu0
    %553 = vdwg.mxu0
    %555 = vrot.lane.b32.xlu0 %v431, 96
    %v556 = vpop.permute.xlu0 %555
    %558 = vrot.lane.b32.xlu0 %v432, 96
    %v559 = vpop.permute.xlu0 %558
    %v561 = vsel %vm433, %v556, 0
    %v564 = vsel %vm433, %v559, 0
    %566 = vmatprep.subr.bf16.mxu0 0
    %567 = vmatpush1.bf16.xpose.msra.mxu0 %v564
    %568 = vmatprep.subr.bf16.mxu0 0
    %569 = vmatpush1.bf16.xpose.msra.mxu0 0
    %570 = vmatprep.subr.bf16.mxu0 0
    %571 = vmatpush1.bf16.xpose.msra.mxu0 0
    %572 = vmatprep.subr.bf16.mxu0 0
    %573 = vmatpush1.bf16.xpose.msra.mxu0 0
    %574 = vmatprep.subr.bf16.mxu0 0
    %575 = vmatpush1.bf16.xpose.msra.mxu0 0
    %576 = vmatprep.subr.bf16.mxu0 0
    %577 = vmatpush1.bf16.xpose.msra.mxu0 0
    %578 = vmatprep.subr.bf16.mxu0 0
    %579 = vmatpush1.bf16.xpose.msra.mxu0 0
    %580 = vmatprep.subr.bf16.mxu0 0
    %581 = vmatpush1.bf16.xpose.msra.mxu0 0
    %582 = vmatprep.subr.bf16.mxu0 0
    %583 = vmatpush1.bf16.xpose.msra.mxu0 0
    %584 = vmatprep.subr.bf16.mxu0 0
    %585 = vmatpush1.bf16.xpose.msra.mxu0 0
    %586 = vmatprep.subr.bf16.mxu0 0
    %587 = vmatpush1.bf16.xpose.msra.mxu0 0
    %588 = vmatprep.subr.bf16.mxu0 0
    %589 = vmatpush1.bf16.xpose.msra.mxu0 0
    %590 = vmatprep.subr.bf16.mxu0 0
    %591 = vmatpush1.bf16.xpose.msra.mxu0 0
    %592 = vmatprep.subr.bf16.mxu0 0
    %593 = vmatpush1.bf16.xpose.msra.mxu0 0
    %594 = vmatprep.subr.bf16.mxu0 0
    %595 = vmatpush1.bf16.xpose.msra.mxu0 0
    %596 = vmatprep.subr.bf16.mxu0 0
    %597 = vmatpush1.bf16.xpose.msra.mxu0 0
    %598 = vmatprep.mubr.bf16.mxu0 0
    %599 = vmatmul.mubr.bf16.gmra.mrb[0].mxu0 %v561
    %v600 = vpop.f32.mrb[0].mxu0
    %v601 = vadd.f32 0.0, %v600
    %v602 = vpop.f32.mrb[0].mxu0
    %v603 = vpop.f32.mrb[0].mxu0
    %v604 = vadd.f32 0.0, %v603
    %v605 = vpop.f32.mrb[0].mxu0
    %606 = vdwg.mxu0
    %v607 = vmul.f32 %v601, 0.17677669
    %v608 = vmul.f32 %v604, 0.17677669
    %v609 = vadd.f32 %v607, %v113
    %v610 = vadd.f32 %v608, %v114
    %v611 = vsel %vm485, %v609, -inf
    %612 = vmax.xlane.f32.xlu0 %v611
    %v613 = vpop.xlane.xlu0 %612
    %v614 = vsel %vm485, %v610, -inf
    %615 = vmax.xlane.f32.xlu0 %v614
    %v616 = vpop.xlane.xlu0 %615
    %v617 = vsub.f32 %v609, %v613
    %v618 = vsub.f32 %v610, %v616
    %v619 = vmul.f32 %v617, 1.442695
    %v620 = vpow.pop %v619
    %v621 = vmul.f32 %v618, 1.442695
    %v622 = vpow.pop %v621
    %v623 = vsel %vm485, %v620, 0.0
    %624 = vadd.xlane.f32.xlu0 %v623
    %v625 = vpop.xlane.xlu0 %624
    %v626 = vsel %vm485, %v622, 0.0
    %627 = vadd.xlane.f32.xlu0 %v626
    %v628 = vpop.xlane.xlu0 %627
    %v629 = vrcp.pop %v625
    %v630 = vmul.f32 %v620, %v629
    %v631 = vrcp.pop %v628
    %v632 = vmul.f32 %v622, %v631
    %v633 = vpack.c.bf16 %v632, %v630
    %635 = vrot.lane.b32.xlu0 %v509, 96
    %v636 = vpop.permute.xlu0 %635
    %v639 = vsel %vm485, %v633, 0
    %641 = vmatprep.subr.bf16.mxu0 0
    %642 = vmatpush1.bf16.msra.mxu0 %v636
    %643 = vmatprep.subr.bf16.mxu0 0
    %644 = vmatpush1.bf16.msra.mxu0 0
    %645 = vmatprep.subr.bf16.mxu0 0
    %646 = vmatpush1.bf16.msra.mxu0 0
    %647 = vmatprep.subr.bf16.mxu0 0
    %648 = vmatpush1.bf16.msra.mxu0 0
    %649 = vmatprep.subr.bf16.mxu0 0
    %650 = vmatpush1.bf16.msra.mxu0 0
    %651 = vmatprep.subr.bf16.mxu0 0
    %652 = vmatpush1.bf16.msra.mxu0 0
    %653 = vmatprep.subr.bf16.mxu0 0
    %654 = vmatpush1.bf16.msra.mxu0 0
    %655 = vmatprep.subr.bf16.mxu0 0
    %656 = vmatpush1.bf16.msra.mxu0 0
    %657 = vmatprep.subr.bf16.mxu0 0
    %658 = vmatpush1.bf16.msra.mxu0 0
    %659 = vmatprep.subr.bf16.mxu0 0
    %660 = vmatpush1.bf16.msra.mxu0 0
    %661 = vmatprep.subr.bf16.mxu0 0
    %662 = vmatpush1.bf16.msra.mxu0 0
    %663 = vmatprep.subr.bf16.mxu0 0
    %664 = vmatpush1.bf16.msra.mxu0 0
    %665 = vmatprep.subr.bf16.mxu0 0
    %666 = vmatpush1.bf16.msra.mxu0 0
    %667 = vmatprep.subr.bf16.mxu0 0
    %668 = vmatpush1.bf16.msra.mxu0 0
    %669 = vmatprep.subr.bf16.mxu0 0
    %670 = vmatpush1.bf16.msra.mxu0 0
    %671 = vmatprep.subr.bf16.mxu0 0
    %672 = vmatpush1.bf16.msra.mxu0 0
    %673 = vmatprep.mubr.bf16.mxu0 0
    %674 = vmatmul.mubr.bf16.gmra.mrb[0].mxu0 %v639
    %v675 = vpop.f32.mrb[0].mxu0
    %v676 = vadd.f32 0.0, %v675
    %v677 = vpop.f32.mrb[0].mxu0
    %v678 = vpop.f32.mrb[0].mxu0
    %v679 = vadd.f32 0.0, %v678
    %v680 = vpop.f32.mrb[0].mxu0
    %681 = vdwg.mxu0
    %684 = vrot.lane.b32.xlu0 %v676, 32
    %v685 = vpop.permute.xlu0 %684
    %686 = vrot.lane.b32.xlu0 %v679, 32
    %v687 = vpop.permute.xlu0 %686
    %v690 = vsel %vm433, %v548, %v685
    %v691 = vsel %vm433, %v551, %v687
    %v692 = vld [vmem:[%s4] sm:$0xff]
    %v693 = vld [vmem:[%s4 + $0x8] sm:$0xff]
    %v694 = vld [vmem:[%s4 + $0x10] sm:$0xff]
    %v695 = vld [vmem:[%s4 + $0x18] sm:$0xff]
    %v696 = vld [vmem:[%s4 + $0x20] sm:$0xff]
    %v697 = vld [vmem:[%s4 + $0x28] sm:$0xff]
    %v698 = vld [vmem:[%s4 + $0x30] sm:$0xff]
    %v699 = vld [vmem:[%s4 + $0x38] sm:$0xff]
    %v700 = vpack.c.bf16 %v691, %v690
    %v701 = vpack.c.bf16 %v693, %v692
    %v702 = vpack.c.bf16 %v695, %v694
    %v703 = vpack.c.bf16 %v697, %v696
    %v704 = vpack.c.bf16 %v699, %v698
    %v706 = vsel %vm118, %v700, 0
    %708 = vmatprep.subr.bf16.mxu0 0
    %709 = vmatpush1.bf16.msra.mxu0 %v701
    %710 = vmatprep.subr.bf16.mxu0 0
    %711 = vmatpush1.bf16.msra.mxu0 %v702
    %712 = vmatprep.subr.bf16.mxu0 0
    %713 = vmatpush1.bf16.msra.mxu0 %v703
    %714 = vmatprep.subr.bf16.mxu0 0
    %715 = vmatpush1.bf16.msra.mxu0 %v704
    %716 = vmatprep.subr.bf16.mxu0 0
    %717 = vmatpush1.bf16.msra.mxu0 0
    %718 = vmatprep.subr.bf16.mxu0 0
    %719 = vmatpush1.bf16.msra.mxu0 0
    %720 = vmatprep.subr.bf16.mxu0 0
    %721 = vmatpush1.bf16.msra.mxu0 0
    %722 = vmatprep.subr.bf16.mxu0 0
    %723 = vmatpush1.bf16.msra.mxu0 0
    %724 = vmatprep.subr.bf16.mxu0 0
    %725 = vmatpush1.bf16.msra.mxu0 0
    %726 = vmatprep.subr.bf16.mxu0 0
    %727 = vmatpush1.bf16.msra.mxu0 0
    %728 = vmatprep.subr.bf16.mxu0 0
    %729 = vmatpush1.bf16.msra.mxu0 0
    %730 = vmatprep.subr.bf16.mxu0 0
    %731 = vmatpush1.bf16.msra.mxu0 0
    %732 = vmatprep.subr.bf16.mxu0 0
    %733 = vmatpush1.bf16.msra.mxu0 0
    %734 = vmatprep.subr.bf16.mxu0 0
    %735 = vmatpush1.bf16.msra.mxu0 0
    %736 = vmatprep.subr.bf16.mxu0 0
    %737 = vmatpush1.bf16.msra.mxu0 0
    %738 = vmatprep.subr.bf16.mxu0 0
    %739 = vmatpush1.bf16.msra.mxu0 0
    %740 = vmatprep.mubr.bf16.mxu0 0
    %741 = vmatmul.mubr.bf16.gmra.mrb[0].mxu0 %v706
    %v742 = vpop.f32.mrb[0].mxu0
    %v743 = vadd.f32 0.0, %v742
    %v744 = vpop.f32.mrb[0].mxu0
    %v745 = vpop.f32.mrb[0].mxu0
    %v746 = vadd.f32 0.0, %v745
    %v747 = vpop.f32.mrb[0].mxu0
    %748 = vdwg.mxu0
    %v749 = vadd.f32 %v99, %v743
    %v750 = vadd.f32 %v100, %v746
    %v751 = vld [vmem:[%s11] sm:$0x1]
    %v752 = vmul.f32 %v749, %v749
    %v753 = vmul.f32 %v750, %v750
    %v754 = vsel %vm118, %v752, 0.0
    %755 = vadd.xlane.f32.xlu0 %v754
    %v756 = vpop.xlane.xlu0 %755
    %v757 = vsel %vm118, %v753, 0.0
    %758 = vadd.xlane.f32.xlu0 %v757
    %v759 = vpop.xlane.xlu0 %758
    %v760 = vmul.f32 %v756, %v125
    %v761 = vmul.f32 %v759, %v125
    %v762 = vadd.f32 %v760, 1e-05
    %v763 = vadd.f32 %v761, 1e-05
    %v764 = vrsqrt.pop %v762
    %v765 = vrsqrt.pop %v763
    %v766 = vmul.f32 %v749, %v764
    %v767 = vmul.f32 %v750, %v765
    %v769 = vlaneseq
    %v770 = vshrl.u32 %v769, 7
    %v771 = vsub.s32 0, %v770
    %v772 = vrot.slane %v751, %v771
    %v774 = vmul.f32 %v766, %v772
    %v775 = vmul.f32 %v767, %v772
    %v776 = vld [vmem:[%s5] sm:$0xff]
    %v777 = vld [vmem:[%s5 + $0x8] sm:$0xff]
    %v778 = vld [vmem:[%s5 + $0x10] sm:$0xff]
    %v779 = vld [vmem:[%s5 + $0x18] sm:$0xff]
    %v780 = vld [vmem:[%s5 + $0x20] sm:$0xff]
    %v781 = vld [vmem:[%s5 + $0x28] sm:$0xff]
    %v782 = vld [vmem:[%s5 + $0x30] sm:$0xff]
    %v783 = vld [vmem:[%s5 + $0x38] sm:$0xff]
    %v784 = vpack.c.bf16 %v775, %v774
    %v785 = vpack.c.bf16 %v777, %v776
    %v786 = vpack.c.bf16 %v779, %v778
    %v787 = vpack.c.bf16 %v781, %v780
    %v788 = vpack.c.bf16 %v783, %v782
    %v790 = vsel %vm118, %v784, 0
    %792 = vmatprep.subr.bf16.mxu0 0
    %793 = vmatpush1.bf16.msra.mxu0 %v785
    %794 = vmatprep.subr.bf16.mxu0 0
    %795 = vmatpush1.bf16.msra.mxu0 %v786
    %796 = vmatprep.subr.bf16.mxu0 0
    %797 = vmatpush1.bf16.msra.mxu0 %v787
    %798 = vmatprep.subr.bf16.mxu0 0
    %799 = vmatpush1.bf16.msra.mxu0 %v788
    %800 = vmatprep.subr.bf16.mxu0 0
    %801 = vmatpush1.bf16.msra.mxu0 0
    %802 = vmatprep.subr.bf16.mxu0 0
    %803 = vmatpush1.bf16.msra.mxu0 0
    %804 = vmatprep.subr.bf16.mxu0 0
    %805 = vmatpush1.bf16.msra.mxu0 0
    %806 = vmatprep.subr.bf16.mxu0 0
    %807 = vmatpush1.bf16.msra.mxu0 0
    %808 = vmatprep.subr.bf16.mxu0 0
    %809 = vmatpush1.bf16.msra.mxu0 0
    %810 = vmatprep.subr.bf16.mxu0 0
    %811 = vmatpush1.bf16.msra.mxu0 0
    %812 = vmatprep.subr.bf16.mxu0 0
    %813 = vmatpush1.bf16.msra.mxu0 0
    %814 = vmatprep.subr.bf16.mxu0 0
    %815 = vmatpush1.bf16.msra.mxu0 0
    %816 = vmatprep.subr.bf16.mxu0 0
    %817 = vmatpush1.bf16.msra.mxu0 0
    %818 = vmatprep.subr.bf16.mxu0 0
    %819 = vmatpush1.bf16.msra.mxu0 0
    %820 = vmatprep.subr.bf16.mxu0 0
    %821 = vmatpush1.bf16.msra.mxu0 0
    %822 = vmatprep.subr.bf16.mxu0 0
    %823 = vmatpush1.bf16.msra.mxu0 0
    %824 = vmatprep.mubr.bf16.mxu0 0
    %825 = vmatmul.mubr.bf16.gmra.mrb[0].mxu0 %v790
    %v826 = vpop.f32.mrb[0].mxu0
    %v827 = vadd.f32 0.0, %v826
    %v828 = vpop.f32.mrb[0].mxu0
    %v829 = vpop.f32.mrb[0].mxu0
    %v830 = vadd.f32 0.0, %v829
    %v831 = vpop.f32.mrb[0].mxu0
    %832 = vdwg.mxu0
    %v833 = vld [vmem:[#allocation2] sm:$0xff]
    %v834 = vld [vmem:[#allocation2 + $0x8] sm:$0xff]
    %v835 = vld [vmem:[#allocation2 + $0x10] sm:$0xff]
    %v836 = vld [vmem:[#allocation2 + $0x18] sm:$0xff]
    %v837 = vld [vmem:[#allocation2 + $0x20] sm:$0xff]
    %v838 = vld [vmem:[#allocation2 + $0x28] sm:$0xff]
    %v839 = vld [vmem:[#allocation2 + $0x30] sm:$0xff]
    %v840 = vld [vmem:[#allocation2 + $0x38] sm:$0xff]
    %v841 = vpack.c.bf16 %v834, %v833
    %v842 = vpack.c.bf16 %v836, %v835
    %v843 = vpack.c.bf16 %v838, %v837
    %v844 = vpack.c.bf16 %v840, %v839
    %845 = vmatprep.subr.bf16.mxu0 0
    %846 = vmatpush1.bf16.msra.mxu0 %v841
    %847 = vmatprep.subr.bf16.mxu0 0
    %848 = vmatpush1.bf16.msra.mxu0 %v842
    %849 = vmatprep.subr.bf16.mxu0 0
    %850 = vmatpush1.bf16.msra.mxu0 %v843
    %851 = vmatprep.subr.bf16.mxu0 0
    %852 = vmatpush1.bf16.msra.mxu0 %v844
    %853 = vmatprep.subr.bf16.mxu0 0
    %854 = vmatpush1.bf16.msra.mxu0 0
    %855 = vmatprep.subr.bf16.mxu0 0
    %856 = vmatpush1.bf16.msra.mxu0 0
    %857 = vmatprep.subr.bf16.mxu0 0
    %858 = vmatpush1.bf16.msra.mxu0 0
    %859 = vmatprep.subr.bf16.mxu0 0
    %860 = vmatpush1.bf16.msra.mxu0 0
    %861 = vmatprep.subr.bf16.mxu0 0
    %862 = vmatpush1.bf16.msra.mxu0 0
    %863 = vmatprep.subr.bf16.mxu0 0
    %864 = vmatpush1.bf16.msra.mxu0 0
    %865 = vmatprep.subr.bf16.mxu0 0
    %866 = vmatpush1.bf16.msra.mxu0 0
    %867 = vmatprep.subr.bf16.mxu0 0
    %868 = vmatpush1.bf16.msra.mxu0 0
    %869 = vmatprep.subr.bf16.mxu0 0
    %870 = vmatpush1.bf16.msra.mxu0 0
    %871 = vmatprep.subr.bf16.mxu0 0
    %872 = vmatpush1.bf16.msra.mxu0 0
    %873 = vmatprep.subr.bf16.mxu0 0
    %874 = vmatpush1.bf16.msra.mxu0 0
    %875 = vmatprep.subr.bf16.mxu0 0
    %876 = vmatpush1.bf16.msra.mxu0 0
    %877 = vmatprep.mubr.bf16.mxu0 0
    %878 = vmatmul.mubr.bf16.gmra.mrb[0].mxu0 %v790
    %v879 = vpop.f32.mrb[0].mxu0
    %v880 = vadd.f32 0.0, %v879
    %v881 = vpop.f32.mrb[0].mxu0
    %v882 = vpop.f32.mrb[0].mxu0
    %v883 = vadd.f32 0.0, %v882
    %v884 = vpop.f32.mrb[0].mxu0
    %885 = vdwg.mxu0
    %v886 = vxor.u32 %v827, 2147483648
    %v887 = vxor.u32 %v830, 2147483648
    %v888 = vmul.f32 %v886, 1.442695
    %v889 = vpow.pop %v888
    %v890 = vmul.f32 %v887, 1.442695
    %v891 = vpow.pop %v890
    %v892 = vadd.f32 %v889, 1.0
    %v893 = vadd.f32 %v891, 1.0
    %v894 = vrcp.pop %v892
    %v895 = vmul.f32 1.0, %v894
    %v896 = vrcp.pop %v893
    %v897 = vmul.f32 1.0, %v896
    %v898 = vmul.f32 %v827, %v895
    %v899 = vmul.f32 %v830, %v897
    %v900 = vmul.f32 %v898, %v880
    %v901 = vmul.f32 %v899, %v883
    %v902 = vld [vmem:[%s7] sm:$0xff]
    %v903 = vld [vmem:[%s7 + $0x8] sm:$0xff]
    %v904 = vld [vmem:[%s7 + $0x10] sm:$0xff]
    %v905 = vld [vmem:[%s7 + $0x18] sm:$0xff]
    %v906 = vld [vmem:[%s7 + $0x20] sm:$0xff]
    %v907 = vld [vmem:[%s7 + $0x28] sm:$0xff]
    %v908 = vld [vmem:[%s7 + $0x30] sm:$0xff]
    %v909 = vld [vmem:[%s7 + $0x38] sm:$0xff]
    %v910 = vld [vmem:[%s7 + $0x40] sm:$0xff]
    %v911 = vld [vmem:[%s7 + $0x48] sm:$0xff]
    %v912 = vld [vmem:[%s7 + $0x50] sm:$0xff]
    %v913 = vld [vmem:[%s7 + $0x58] sm:$0xff]
    %v914 = vld [vmem:[%s7 + $0x60] sm:$0xff]
    %v915 = vld [vmem:[%s7 + $0x68] sm:$0xff]
    %v916 = vld [vmem:[%s7 + $0x70] sm:$0xff]
    %v917 = vld [vmem:[%s7 + $0x78] sm:$0xff]
    %v918 = vpack.c.bf16 %v901, %v900
    %v919 = vpack.c.bf16 %v903, %v902
    %v920 = vpack.c.bf16 %v905, %v904
    %v921 = vpack.c.bf16 %v907, %v906
    %v922 = vpack.c.bf16 %v909, %v908
    %v923 = vpack.c.bf16 %v911, %v910
    %v924 = vpack.c.bf16 %v913, %v912
    %v925 = vpack.c.bf16 %v915, %v914
    %v926 = vpack.c.bf16 %v917, %v916
    %927 = vmatprep.subr.bf16.mxu0 0
    %928 = vmatpush1.bf16.msra.mxu0 %v919
    %929 = vmatprep.subr.bf16.mxu0 0
    %930 = vmatpush1.bf16.msra.mxu0 %v920
    %931 = vmatprep.subr.bf16.mxu0 0
    %932 = vmatpush1.bf16.msra.mxu0 %v921
    %933 = vmatprep.subr.bf16.mxu0 0
    %934 = vmatpush1.bf16.msra.mxu0 %v922
    %935 = vmatprep.subr.bf16.mxu0 0
    %936 = vmatpush1.bf16.msra.mxu0 %v923
    %937 = vmatprep.subr.bf16.mxu0 0
    %938 = vmatpush1.bf16.msra.mxu0 %v924
    %939 = vmatprep.subr.bf16.mxu0 0
    %940 = vmatpush1.bf16.msra.mxu0 %v925
    %941 = vmatprep.subr.bf16.mxu0 0
    %942 = vmatpush1.bf16.msra.mxu0 %v926
    %943 = vmatprep.subr.bf16.mxu0 0
    %944 = vmatpush1.bf16.msra.mxu0 0
    %945 = vmatprep.subr.bf16.mxu0 0
    %946 = vmatpush1.bf16.msra.mxu0 0
    %947 = vmatprep.subr.bf16.mxu0 0
    %948 = vmatpush1.bf16.msra.mxu0 0
    %949 = vmatprep.subr.bf16.mxu0 0
    %950 = vmatpush1.bf16.msra.mxu0 0
    %951 = vmatprep.subr.bf16.mxu0 0
    %952 = vmatpush1.bf16.msra.mxu0 0
    %953 = vmatprep.subr.bf16.mxu0 0
    %954 = vmatpush1.bf16.msra.mxu0 0
    %955 = vmatprep.subr.bf16.mxu0 0
    %956 = vmatpush1.bf16.msra.mxu0 0
    %957 = vmatprep.subr.bf16.mxu0 0
    %958 = vmatpush1.bf16.msra.mxu0 0
    %959 = vmatprep.mubr.bf16.mxu0 0
    %960 = vmatmul.mubr.bf16.gmra.mrb[0].mxu0 %v918
    %v961 = vpop.f32.mrb[0].mxu0
    %v962 = vadd.f32 0.0, %v961
    %v963 = vpop.f32.mrb[0].mxu0
    %v964 = vpop.f32.mrb[0].mxu0
    %v965 = vadd.f32 0.0, %v964
    %v966 = vpop.f32.mrb[0].mxu0
    %967 = vdwg.mxu0
    %v968 = vadd.f32 %v749, %v962
    %v969 = vadd.f32 %v750, %v965
    %v971 = vrot.slane %v969, 7
    %vm973 = vcmask 1040384
    %v974 = vsel %vm973, %v968, %v971
    %v975 = vld [vmem:[%s12] sm:$0x1]
    %v976 = vmul.f32 %v974, %v974
    %vm977 = vcmask 517120
    %v978 = vsel %vm977, %v976, 0.0
    %979 = vadd.xlane.f32.xlu0 %v978
    %v980 = vpop.xlane.xlu0 %979
    %v981 = vmul.f32 %v980, %v125
    %v982 = vadd.f32 %v981, 1e-05
    %v983 = vrsqrt.pop %v982
    %v984 = vmul.f32 %v974, %v983
    %v986 = vlaneseq
    %v987 = vshrl.u32 %v986, 7
    %v988 = vsub.s32 0, %v987
    %v989 = vrot.slane %v975, %v988
    %v991 = vmul.f32 %v984, %v989
    %v992 = vld [vmem:[%s8] sm:$0xff]
    %v993 = vld [vmem:[%s8 + $0x8] sm:$0xff]
    %v994 = vld [vmem:[%s8 + $0x10] sm:$0xff]
    %v995 = vld [vmem:[%s8 + $0x18] sm:$0xff]
    %v996 = vld [vmem:[%s8 + $0x20] sm:$0xff]
    %v997 = vld [vmem:[%s8 + $0x28] sm:$0xff]
    %v998 = vld [vmem:[%s8 + $0x30] sm:$0xff]
    %v999 = vld [vmem:[%s8 + $0x38] sm:$0xff]
    %v1000 = vld [vmem:[%s8 + $0x40] sm:$0xff]
    %v1001 = vld [vmem:[%s8 + $0x48] sm:$0xff]
    %v1002 = vld [vmem:[%s8 + $0x50] sm:$0xff]
    %v1003 = vld [vmem:[%s8 + $0x58] sm:$0xff]
    %v1004 = vld [vmem:[%s8 + $0x60] sm:$0xff]
    %v1005 = vld [vmem:[%s8 + $0x68] sm:$0xff]
    %v1006 = vld [vmem:[%s8 + $0x70] sm:$0xff]
    %v1007 = vld [vmem:[%s8 + $0x78] sm:$0xff]
    %v1008 = vld [vmem:[%s8 + $0x80] sm:$0xff]
    %v1009 = vld [vmem:[%s8 + $0x88] sm:$0xff]
    %v1010 = vld [vmem:[%s8 + $0x90] sm:$0xff]
    %v1011 = vld [vmem:[%s8 + $0x98] sm:$0xff]
    %v1012 = vld [vmem:[%s8 + $0xa0] sm:$0xff]
    %v1013 = vld [vmem:[%s8 + $0xa8] sm:$0xff]
    %v1014 = vld [vmem:[%s8 + $0xb0] sm:$0xff]
    %v1015 = vld [vmem:[%s8 + $0xb8] sm:$0xff]
    %v1016 = vld [vmem:[%s8 + $0xc0] sm:$0xff]
    %v1017 = vld [vmem:[%s8 + $0xc8] sm:$0xff]
    %v1018 = vld [vmem:[%s8 + $0xd0] sm:$0xff]
    %v1019 = vld [vmem:[%s8 + $0xd8] sm:$0xff]
    %v1020 = vld [vmem:[%s8 + $0xe0] sm:$0xff]
    %v1021 = vld [vmem:[%s8 + $0xe8] sm:$0xff]
    %v1022 = vld [vmem:[%s8 + $0xf0] sm:$0xff]
    %v1023 = vld [vmem:[%s8 + $0xf8] sm:$0xff]
    %v1024 = vpack.c.bf16 %v991, %v991
    %v1025 = vpack.c.bf16 %v996, %v992
    %v1026 = vpack.c.bf16 %v997, %v993
    %v1027 = vpack.c.bf16 %v998, %v994
    %v1028 = vpack.c.bf16 %v999, %v995
    %v1029 = vpack.c.bf16 %v1004, %v1000
    %v1030 = vpack.c.bf16 %v1005, %v1001
    %v1031 = vpack.c.bf16 %v1006, %v1002
    %v1032 = vpack.c.bf16 %v1007, %v1003
    %v1033 = vpack.c.bf16 %v1012, %v1008
    %v1034 = vpack.c.bf16 %v1013, %v1009
    %v1035 = vpack.c.bf16 %v1014, %v1010
    %v1036 = vpack.c.bf16 %v1015, %v1011
    %v1037 = vpack.c.bf16 %v1020, %v1016
    %v1038 = vpack.c.bf16 %v1021, %v1017
    %v1039 = vpack.c.bf16 %v1022, %v1018
    %v1040 = vpack.c.bf16 %v1023, %v1019
    %v1042 = vsel %vm118, %v1024, 0
    %1044 = vmatprep.subr.bf16.mxu0 %v1026
    %1045 = vmatpush1.bf16.msra.mxu0 %v1025
    %1046 = vmatprep.subr.bf16.mxu0 %v1030
    %1047 = vmatpush1.bf16.msra.mxu0 %v1029
    %1048 = vmatprep.subr.bf16.mxu0 %v1034
    %1049 = vmatpush1.bf16.msra.mxu0 %v1033
    %1050 = vmatprep.subr.bf16.mxu0 %v1038
    %1051 = vmatpush1.bf16.msra.mxu0 %v1037
    %1052 = vmatprep.subr.bf16.mxu0 0
    %1053 = vmatpush1.bf16.msra.mxu0 0
    %1054 = vmatprep.subr.bf16.mxu0 0
    %1055 = vmatpush1.bf16.msra.mxu0 0
    %1056 = vmatprep.subr.bf16.mxu0 0
    %1057 = vmatpush1.bf16.msra.mxu0 0
    %1058 = vmatprep.subr.bf16.mxu0 0
    %1059 = vmatpush1.bf16.msra.mxu0 0
    %1060 = vmatprep.subr.bf16.mxu0 0
    %1061 = vmatpush1.bf16.msra.mxu0 0
    %1062 = vmatprep.subr.bf16.mxu0 0
    %1063 = vmatpush1.bf16.msra.mxu0 0
    %1064 = vmatprep.subr.bf16.mxu0 0
    %1065 = vmatpush1.bf16.msra.mxu0 0
    %1066 = vmatprep.subr.bf16.mxu0 0
    %1067 = vmatpush1.bf16.msra.mxu0 0
    %1068 = vmatprep.subr.bf16.mxu0 0
    %1069 = vmatpush1.bf16.msra.mxu0 0
    %1070 = vmatprep.subr.bf16.mxu0 0
    %1071 = vmatpush1.bf16.msra.mxu0 0
    %1072 = vmatprep.subr.bf16.mxu0 0
    %1073 = vmatpush1.bf16.msra.mxu0 0
    %1074 = vmatprep.subr.bf16.mxu0 0
    %1075 = vmatpush1.bf16.msra.mxu0 0
    %1076 = vmatprep.mubr.bf16.mxu0 0
    %1077 = vmatmul.mubr.bf16.gmra.mrb[0].mxu0 %v1042
    %v1078 = vpop.f32.mrb[0].mxu0
    %v1079 = vadd.f32 0.0, %v1078
    %v1080 = vpop.f32.mrb[0].mxu0
    %v1081 = vadd.f32 0.0, %v1080
    %v1082 = vpop.f32.mrb[0].mxu0
    %v1083 = vpop.f32.mrb[0].mxu0
    %1084 = vdwg.mxu0
    %1085 = vmatprep.subr.bf16.mxu0 %v1028
    %1086 = vmatpush1.bf16.msra.mxu0 %v1027
    %1087 = vmatprep.subr.bf16.mxu0 %v1032
    %1088 = vmatpush1.bf16.msra.mxu0 %v1031
    %1089 = vmatprep.subr.bf16.mxu0 %v1036
    %1090 = vmatpush1.bf16.msra.mxu0 %v1035
    %1091 = vmatprep.subr.bf16.mxu0 %v1040
    %1092 = vmatpush1.bf16.msra.mxu0 %v1039
    %1093 = vmatprep.subr.bf16.mxu0 0
    %1094 = vmatpush1.bf16.msra.mxu0 0
    %1095 = vmatprep.subr.bf16.mxu0 0
    %1096 = vmatpush1.bf16.msra.mxu0 0
    %1097 = vmatprep.subr.bf16.mxu0 0
    %1098 = vmatpush1.bf16.msra.mxu0 0
    %1099 = vmatprep.subr.bf16.mxu0 0
    %1100 = vmatpush1.bf16.msra.mxu0 0
    %1101 = vmatprep.subr.bf16.mxu0 0
    %1102 = vmatpush1.bf16.msra.mxu0 0
    %1103 = vmatprep.subr.bf16.mxu0 0
    %1104 = vmatpush1.bf16.msra.mxu0 0
    %1105 = vmatprep.subr.bf16.mxu0 0
    %1106 = vmatpush1.bf16.msra.mxu0 0
    %1107 = vmatprep.subr.bf16.mxu0 0
    %1108 = vmatpush1.bf16.msra.mxu0 0
    %1109 = vmatprep.subr.bf16.mxu0 0
    %1110 = vmatpush1.bf16.msra.mxu0 0
    %1111 = vmatprep.subr.bf16.mxu0 0
    %1112 = vmatpush1.bf16.msra.mxu0 0
    %1113 = vmatprep.subr.bf16.mxu0 0
    %1114 = vmatpush1.bf16.msra.mxu0 0
    %1115 = vmatprep.subr.bf16.mxu0 0
    %1116 = vmatpush1.bf16.msra.mxu0 0
    %1117 = vmatprep.mubr.bf16.mxu0 0
    %1118 = vmatmul.mubr.bf16.gmra.mrb[0].mxu0 %v1042
    %v1119 = vpop.f32.mrb[0].mxu0
    %v1120 = vadd.f32 0.0, %v1119
    %v1121 = vpop.f32.mrb[0].mxu0
    %v1122 = vadd.f32 0.0, %v1121
    %v1123 = vpop.f32.mrb[0].mxu0
    %v1124 = vpop.f32.mrb[0].mxu0
    %1125 = vdwg.mxu0
    %vm1126 = vcmask 1041408
    %v1127 = vsel %vm1126, %v1079, -inf
    %v1128 = vsel %vm1126, %v1081, -inf
    %v1129 = vsel %vm1126, %v1120, -inf
    %v1130 = vsel %vm1126, %v1122, -inf
    %v1131 = vmax.f32 %v1127, %v1128
    %v1132 = vmax.f32 %v1129, %v1130
    %v1133 = vmax.f32 %v1131, %v1132
    %1134 = vmax.xlane.f32.xlu0 %v1133
    %v1135 = vpop.xlane.xlu0 %1134
    %v1136 = vsub.f32 %v1079, %v1135
    %v1137 = vsub.f32 %v1081, %v1135
    %v1138 = vsub.f32 %v1120, %v1135
    %v1139 = vsub.f32 %v1122, %v1135
    %v1140 = vmul.f32 %v1136, 1.442695
    %v1141 = vpow.pop %v1140
    %v1142 = vmul.f32 %v1137, 1.442695
    %v1143 = vpow.pop %v1142
    %v1144 = vmul.f32 %v1138, 1.442695
    %v1145 = vpow.pop %v1144
    %v1146 = vmul.f32 %v1139, 1.442695
    %v1147 = vpow.pop %v1146
    %v1148 = vsel %vm1126, %v1141, 0.0
    %v1149 = vsel %vm1126, %v1143, 0.0
    %v1150 = vadd.f32 %v1148, %v1149
    %v1151 = vsel %vm1126, %v1145, 0.0
    %v1152 = vadd.f32 %v1150, %v1151
    %v1153 = vsel %vm1126, %v1147, 0.0
    %v1154 = vadd.f32 %v1152, %v1153
    %1155 = vadd.xlane.f32.xlu0 %v1154
    %v1156 = vpop.xlane.xlu0 %1155
    %v1157 = vlog2.pop %v1156
    %v1158 = vmul.f32 %v1157, 0.6931472
    %v1159 = vadd.f32 %v1158, %v1135
    %v1160 = vsub.f32 %v1079, %v1159
    %v1161 = vsub.f32 %v1081, %v1159
    %v1162 = vsub.f32 %v1120, %v1159
    %v1163 = vsub.f32 %v1122, %v1159
    %v1164 = vld [vmem:[%s16] sm:$0xff]
    %v1165 = vld [vmem:[%s16 + $0x8] sm:$0xff]
    %v1166 = vld [vmem:[%s16 + $0x10] sm:$0xff]
    %v1167 = vld [vmem:[%s16 + $0x18] sm:$0xff]
    %v1168 = vld [vmem:[%s16 + $0x20] sm:$0xff]
    %v1169 = vld [vmem:[%s16 + $0x28] sm:$0xff]
    %v1170 = vld [vmem:[%s16 + $0x30] sm:$0xff]
    %v1171 = vld [vmem:[%s16 + $0x38] sm:$0xff]
    %v1172 = vld [vmem:[%s16 + $0x40] sm:$0xff]
    %v1173 = vld [vmem:[%s16 + $0x48] sm:$0xff]
    %v1174 = vld [vmem:[%s16 + $0x50] sm:$0xff]
    %v1175 = vld [vmem:[%s16 + $0x58] sm:$0xff]
    %v1176 = vld [vmem:[%s16 + $0x60] sm:$0xff]
    %v1177 = vld [vmem:[%s16 + $0x68] sm:$0xff]
    %v1178 = vld [vmem:[%s16 + $0x70] sm:$0xff]
    %v1179 = vld [vmem:[%s16 + $0x78] sm:$0xff]
    %v1180 = vld [vmem:[%s16 + $0x80] sm:$0xff]
    %v1181 = vld [vmem:[%s16 + $0x88] sm:$0xff]
    %v1182 = vld [vmem:[%s16 + $0x90] sm:$0xff]
    %v1183 = vld [vmem:[%s16 + $0x98] sm:$0xff]
    %v1184 = vld [vmem:[%s16 + $0xa0] sm:$0xff]
    %v1185 = vld [vmem:[%s16 + $0xa8] sm:$0xff]
    %v1186 = vld [vmem:[%s16 + $0xb0] sm:$0xff]
    %v1187 = vld [vmem:[%s16 + $0xb8] sm:$0xff]
    %v1188 = vld [vmem:[%s16 + $0xc0] sm:$0xff]
    %v1189 = vld [vmem:[%s16 + $0xc8] sm:$0xff]
    %v1190 = vld [vmem:[%s16 + $0xd0] sm:$0xff]
    %v1191 = vld [vmem:[%s16 + $0xd8] sm:$0xff]
    %v1192 = vld [vmem:[%s16 + $0xe0] sm:$0xff]
    %v1193 = vld [vmem:[%s16 + $0xe8] sm:$0xff]
    %v1194 = vld [vmem:[%s16 + $0xf0] sm:$0xff]
    %v1195 = vld [vmem:[%s16 + $0xf8] sm:$0xff]
    %v1196 = vld [vmem:[%s16 + $0x100] sm:$0xff]
    %v1197 = vld [vmem:[%s16 + $0x108] sm:$0xff]
    %v1198 = vld [vmem:[%s16 + $0x110] sm:$0xff]
    %v1199 = vld [vmem:[%s16 + $0x118] sm:$0xff]
    %v1200 = vld [vmem:[%s16 + $0x120] sm:$0xff]
    %v1201 = vld [vmem:[%s16 + $0x128] sm:$0xff]
    %v1202 = vld [vmem:[%s16 + $0x130] sm:$0xff]
    %v1203 = vld [vmem:[%s16 + $0x138] sm:$0xff]
    %v1204 = vld [vmem:[%s16 + $0x140] sm:$0xff]
    %v1205 = vld [vmem:[%s16 + $0x148] sm:$0xff]
    %v1206 = vld [vmem:[%s16 + $0x150] sm:$0xff]
    %v1207 = vld [vmem:[%s16 + $0x158] sm:$0xff]
    %v1208 = vld [vmem:[%s16 + $0x160] sm:$0xff]
    %v1209 = vld [vmem:[%s16 + $0x168] sm:$0xff]
    %v1210 = vld [vmem:[%s16 + $0x170] sm:$0xff]
    %v1211 = vld [vmem:[%s16 + $0x178] sm:$0xff]
    %v1212 = vld [vmem:[%s16 + $0x180] sm:$0xff]
    %v1213 = vld [vmem:[%s16 + $0x188] sm:$0xff]
    %v1214 = vld [vmem:[%s16 + $0x190] sm:$0xff]
    %v1215 = vld [vmem:[%s16 + $0x198] sm:$0xff]
    %v1216 = vld [vmem:[%s16 + $0x1a0] sm:$0xff]
    %v1217 = vld [vmem:[%s16 + $0x1a8] sm:$0xff]
    %v1218 = vld [vmem:[%s16 + $0x1b0] sm:$0xff]
    %v1219 = vld [vmem:[%s16 + $0x1b8] sm:$0xff]
    %v1220 = vld [vmem:[%s16 + $0x1c0] sm:$0xff]
    %v1221 = vld [vmem:[%s16 + $0x1c8] sm:$0xff]
    %v1222 = vld [vmem:[%s16 + $0x1d0] sm:$0xff]
    %v1223 = vld [vmem:[%s16 + $0x1d8] sm:$0xff]
    %v1224 = vld [vmem:[%s16 + $0x1e0] sm:$0xff]
    %v1225 = vld [vmem:[%s16 + $0x1e8] sm:$0xff]
    %v1226 = vld [vmem:[%s16 + $0x1f0] sm:$0xff]
    %v1227 = vld [vmem:[%s16 + $0x1f8] sm:$0xff]
    %v1228 = vpack.c.bf16 %v1160, %v1160
    %v1229 = vpack.c.bf16 %v1161, %v1161
    %v1230 = vpack.c.bf16 %v1162, %v1162
    %v1231 = vpack.c.bf16 %v1163, %v1163
    %v1232 = vpack.c.bf16 %v1165, %v1164
    %v1233 = vpack.c.bf16 %v1167, %v1166
    %v1234 = vpack.c.bf16 %v1169, %v1168
    %v1235 = vpack.c.bf16 %v1171, %v1170
    %v1236 = vpack.c.bf16 %v1173, %v1172
    %v1237 = vpack.c.bf16 %v1175, %v1174
    %v1238 = vpack.c.bf16 %v1177, %v1176
    %v1239 = vpack.c.bf16 %v1179, %v1178
    %v1240 = vpack.c.bf16 %v1181, %v1180
    %v1241 = vpack.c.bf16 %v1183, %v1182
    %v1242 = vpack.c.bf16 %v1185, %v1184
    %v1243 = vpack.c.bf16 %v1187, %v1186
    %v1244 = vpack.c.bf16 %v1189, %v1188
    %v1245 = vpack.c.bf16 %v1191, %v1190
    %v1246 = vpack.c.bf16 %v1193, %v1192
    %v1247 = vpack.c.bf16 %v1195, %v1194
    %v1248 = vpack.c.bf16 %v1197, %v1196
    %v1249 = vpack.c.bf16 %v1199, %v1198
    %v1250 = vpack.c.bf16 %v1201, %v1200
    %v1251 = vpack.c.bf16 %v1203, %v1202
    %v1252 = vpack.c.bf16 %v1205, %v1204
    %v1253 = vpack.c.bf16 %v1207, %v1206
    %v1254 = vpack.c.bf16 %v1209, %v1208
    %v1255 = vpack.c.bf16 %v1211, %v1210
    %v1256 = vpack.c.bf16 %v1213, %v1212
    %v1257 = vpack.c.bf16 %v1215, %v1214
    %v1258 = vpack.c.bf16 %v1217, %v1216
    %v1259 = vpack.c.bf16 %v1219, %v1218
    %v1260 = vpack.c.bf16 %v1221, %v1220
    %v1261 = vpack.c.bf16 %v1223, %v1222
    %v1262 = vpack.c.bf16 %v1225, %v1224
    %v1263 = vpack.c.bf16 %v1227, %v1226
    %1264 = vmatprep.subr.bf16.mxu0 0
    %1265 = vmatpush1.bf16.msra.mxu0 %v1232
    %1266 = vmatprep.subr.bf16.mxu0 0
    %1267 = vmatpush1.bf16.msra.mxu0 %v1233
    %1268 = vmatprep.subr.bf16.mxu0 0
    %1269 = vmatpush1.bf16.msra.mxu0 %v1234
    %1270 = vmatprep.subr.bf16.mxu0 0
    %1271 = vmatpush1.bf16.msra.mxu0 %v1235
    %1272 = vmatprep.subr.bf16.mxu0 0
    %1273 = vmatpush1.bf16.msra.mxu0 %v1236
    %1274 = vmatprep.subr.bf16.mxu0 0
    %1275 = vmatpush1.bf16.msra.mxu0 %v1237
    %1276 = vmatprep.subr.bf16.mxu0 0
    %1277 = vmatpush1.bf16.msra.mxu0 %v1238
    %1278 = vmatprep.subr.bf16.mxu0 0
    %1279 = vmatpush1.bf16.msra.mxu0 %v1239
    %1280 = vmatprep.subr.bf16.mxu0 0
    %1281 = vmatpush1.bf16.msra.mxu0 %v1240
    %1282 = vmatprep.subr.bf16.mxu0 0
    %1283 = vmatpush1.bf16.msra.mxu0 %v1241
    %1284 = vmatprep.subr.bf16.mxu0 0
    %1285 = vmatpush1.bf16.msra.mxu0 %v1242
    %1286 = vmatprep.subr.bf16.mxu0 0
    %1287 = vmatpush1.bf16.msra.mxu0 %v1243
    %1288 = vmatprep.subr.bf16.mxu0 0
    %1289 = vmatpush1.bf16.msra.mxu0 %v1244
    %1290 = vmatprep.subr.bf16.mxu0 0
    %1291 = vmatpush1.bf16.msra.mxu0 %v1245
    %1292 = vmatprep.subr.bf16.mxu0 0
    %1293 = vmatpush1.bf16.msra.mxu0 %v1246
    %1294 = vmatprep.subr.bf16.mxu0 0
    %1295 = vmatpush1.bf16.msra.mxu0 %v1247
    %1296 = vmatprep.mubr.bf16.mxu0 %v1229
    %1297 = vmatmul.mubr.bf16.gmra.mrb[0].mxu0 %v1228
    %v1298 = vpop.f32.mrb[0].mxu0
    %v1299 = vadd.f32 0.0, %v1298
    %v1300 = vpop.f32.mrb[0].mxu0
    %v1301 = vpop.f32.mrb[0].mxu0
    %v1302 = vpop.f32.mrb[0].mxu0
    %1303 = vdwg.mxu0
    %1304 = vmatprep.subr.bf16.mxu0 0
    %1305 = vmatpush1.bf16.msra.mxu0 %v1248
    %1306 = vmatprep.subr.bf16.mxu0 0
    %1307 = vmatpush1.bf16.msra.mxu0 %v1249
    %1308 = vmatprep.subr.bf16.mxu0 0
    %1309 = vmatpush1.bf16.msra.mxu0 %v1250
    %1310 = vmatprep.subr.bf16.mxu0 0
    %1311 = vmatpush1.bf16.msra.mxu0 %v1251
    %1312 = vmatprep.subr.bf16.mxu0 0
    %1313 = vmatpush1.bf16.msra.mxu0 %v1252
    %1314 = vmatprep.subr.bf16.mxu0 0
    %1315 = vmatpush1.bf16.msra.mxu0 %v1253
    %1316 = vmatprep.subr.bf16.mxu0 0
    %1317 = vmatpush1.bf16.msra.mxu0 %v1254
    %1318 = vmatprep.subr.bf16.mxu0 0
    %1319 = vmatpush1.bf16.msra.mxu0 %v1255
    %1320 = vmatprep.subr.bf16.mxu0 0
    %1321 = vmatpush1.bf16.msra.mxu0 %v1256
    %1322 = vmatprep.subr.bf16.mxu0 0
    %1323 = vmatpush1.bf16.msra.mxu0 %v1257
    %1324 = vmatprep.subr.bf16.mxu0 0
    %1325 = vmatpush1.bf16.msra.mxu0 %v1258
    %1326 = vmatprep.subr.bf16.mxu0 0
    %1327 = vmatpush1.bf16.msra.mxu0 %v1259
    %1328 = vmatprep.subr.bf16.mxu0 0
    %1329 = vmatpush1.bf16.msra.mxu0 %v1260
    %1330 = vmatprep.subr.bf16.mxu0 0
    %1331 = vmatpush1.bf16.msra.mxu0 %v1261
    %1332 = vmatprep.subr.bf16.mxu0 0
    %1333 = vmatpush1.bf16.msra.mxu0 %v1262
    %1334 = vmatprep.subr.bf16.mxu0 0
    %1335 = vmatpush1.bf16.msra.mxu0 %v1263
    %1336 = vmatprep.mubr.bf16.mxu0 %v1231
    %1337 = vmatmul.mubr.bf16.gmra.mrb[0].mxu0 %v1230
    %v1338 = vpop.f32.mrb[0].mxu0
    %v1339 = vadd.f32 %v1299, %v1338
    %v1340 = vpop.f32.mrb[0].mxu0
    %v1341 = vpop.f32.mrb[0].mxu0
    %v1342 = vpop.f32.mrb[0].mxu0
    %1343 = vdwg.mxu0
    %1344 = vst [vmem:[#allocation8] sm:$0x3] %v1339
    // Predicated region
    $region82: #{llama_zero_shot_classifier.1} parent=1 // pred_check
      _
    $region83: #{llama_zero_shot_classifier.1} parent=1 // pred_check_branch
      %1346 = sbr.rel (0) target = $region85
    $region84: #{llama_zero_shot_classifier.1} parent=1 // pred_region
      %s1348 = ssub.s32 32, 32
      %1349 = vsyncadd [#allocation4], %s1348
      %s1351 = sshll.u32 [#allocation8], 4
      %s1352 = int_to_ptr.vmem [resolvable:$true] %s1351
      %1354 = dma.vmem_to_hbm [thread:$0]  %s1352, 32, %s17, [#allocation4]
    $region85: #{llama_zero_shot_classifier.1} parent=1 // pred_fallthru
      _
    // Predicated region
    $region86: #{llama_zero_shot_classifier.1} parent=1 // pred_check
      _
    $region87: #{llama_zero_shot_classifier.1} parent=1 // pred_check_branch
      %1356 = sbr.rel (0) target = $region89
    $region88: #{llama_zero_shot_classifier.1} parent=1 // pred_region
      %1357 = dma.done [#allocation4], 32
    $region89: #{llama_zero_shot_classifier.1} parent=1 // pred_fallthru
      _
    %1358 = vsyncpa [#allocation3], 1
    %1359 = vsyncpa [#allocation6], 1
    %1360 = vsyncpa [#allocation4], 1

</llo_original>
